<compile_context>
chip_gen: v5e
topology: v5e:2x2
jax: 0.10.0
libtpu: 0.0.40
codegen_flags: <defaults>
</compile_context>

<pallas_src>
import jax
import jax.numpy as jnp
from jax.experimental import pallas as pl
from jax.experimental.pallas import tpu as pltpu


def _conv_gemm_relu6_kernel(w_ref, at_ref, b_ref, o_ref):
    # w_ref : (Cout, K)   bf16 flattened conv weight, resident across the grid
    # at_ref: (K, TM)     bf16 im2col patches, transposed (K on sublanes, M on lanes)
    # b_ref : (Cout, 1)   f32 bias, broadcast along lanes
    # o_ref : (Cout, TM)  f32 lane-dense output tile
    y = jnp.dot(w_ref[...], at_ref[...], preferred_element_type=jnp.float32)
    y = y + b_ref[...]
    # ReLU6: clamp to [0, 6]
    o_ref[...] = jnp.minimum(jnp.maximum(y, 0.0), 6.0).astype(o_ref.dtype)


def conv2d_relu6(x, weight, bias, *, tm=5248):
    """x: (1, Cin, H, W) NCHW; weight: (Cout, Cin, KH, KW); bias: (Cout,)."""
    N, C, H, W = x.shape
    Cout, Cin, KH, KW = weight.shape
    assert N == 1 and Cin == C
    Ho, Wo = H - KH + 1, W - KW + 1
    K = C * KH * KW          # 27
    M = Ho * Wo              # 10340

    # ---- im2col as ONE fused XLA op, already in A^T layout ------------------
    # Patch feature order is (c, kh, kw) -> matches weight.reshape(Cout, K).
    patches = jax.lax.conv_general_dilated_patches(
        x, filter_shape=(KH, KW), window_strides=(1, 1), padding="VALID",
        dimension_numbers=("NCHW", "OIHW", "NCHW"))           # (1, K, Ho, Wo)
    At = patches.reshape(K, M).astype(jnp.bfloat16)            # (K, M) == A^T

    Wmat = weight.reshape(Cout, K).astype(jnp.bfloat16)        # (Cout, K)
    Bmat = bias.reshape(Cout, 1).astype(jnp.float32)           # (Cout, 1)

    assert tm % 128 == 0
    n_blocks = pl.cdiv(M, tm)    # 2 blocks at the default tm -> balanced on v7x

    flops = 2 * Cout * K * M
    bytes_accessed = 2 * K * M + 2 * Cout * K + 4 * Cout + 4 * Cout * M

    out = pl.pallas_call(
        _conv_gemm_relu6_kernel,
        out_shape=jax.ShapeDtypeStruct((Cout, M), jnp.float32),
        grid_spec=pltpu.PrefetchScalarGridSpec(
            num_scalar_prefetch=0,
            grid=(n_blocks,),
            in_specs=[
                pl.BlockSpec((Cout, K), lambda i: (0, 0)),    # weight, resident
                pl.BlockSpec((K, tm), lambda i: (0, i)),      # A^T tile (ragged last)
                pl.BlockSpec((Cout, 1), lambda i: (0, 0)),    # bias, resident
            ],
            out_specs=pl.BlockSpec((Cout, tm), lambda i: (0, i)),
        ),
        compiler_params=pltpu.CompilerParams(
            # Disjoint output tiles, no accumulator -> safe to split across TCs.
            dimension_semantics=("parallel",),
        ),
        cost_estimate=pl.CostEstimate(
            flops=flops, transcendentals=0, bytes_accessed=bytes_accessed),
    )(Wmat, At, Bmat)

    # Output is already (Cout, M) channel-major and exactly M wide:
    # contiguous reshape only, no slice copy, no transpose.
    return out.reshape(Cout, Ho, Wo)[None]


if __name__ == "__main__":
    key = jax.random.PRNGKey(0)
    kx, kw, kb = jax.random.split(key, 3)

    # Input matches the PyTorch script: x1 = torch.randn(1, 3, 112, 96)
    x1 = jax.random.normal(kx, (1, 3, 112, 96), dtype=jnp.float32)

    # Conv2d(3, 16, 3) parameters, deterministic PyTorch-style uniform init.
    fan_in = 3 * 3 * 3
    bound = 1.0 / jnp.sqrt(float(fan_in))
    weight = jax.random.uniform(kw, (16, 3, 3, 3), jnp.float32, -bound, bound)
    bias = jax.random.uniform(kb, (16,), jnp.float32, -bound, bound)

    fn = jax.jit(conv2d_relu6)
    out = fn(x1, weight, bias)
    out = jax.block_until_ready(out)
    assert out.shape == (1, 16, 110, 94), out.shape

    # Reference check against XLA's f32 conv + relu6.
    # Tolerance loosened vs. the previous version because the GEMM inputs are
    # now bf16 (f32 accumulation); observed error is ~1e-2 absolute worst case.
    ref = jax.lax.conv_general_dilated(
        x1, weight, window_strides=(1, 1), padding="VALID",
        dimension_numbers=("NCHW", "OIHW", "NCHW"),
    ) + bias.reshape(1, 16, 1, 1)
    ref = jnp.clip(ref, 0.0, 6.0)
    assert jnp.allclose(out, ref, atol=5e-2, rtol=1e-2), (
        float(jnp.max(jnp.abs(out - ref))))

    print("KERNEL_OK")
</pallas_src>

<mosaic_0001>
module attributes {stable_mosaic.version = 11 : i64} {
  func.func @_conv_gemm_relu6_kernel(%arg0: i32, %arg1: memref<16x27xbf16, #tpu.memory_space<vmem>>, %arg2: memref<27x5248xbf16, #tpu.memory_space<vmem>>, %arg3: memref<16x1xf32, #tpu.memory_space<vmem>>, %arg4: memref<16x5248xf32, #tpu.memory_space<vmem>>) attributes {dimension_semantics = [#tpu.dimension_semantics<parallel>], iteration_bounds = array<i64: 2>, scalar_prefetch = 0 : i64, scratch_operands = 0 : i64, tpu.core_type = #tpu.core_type<tc>, window_params = [{pipeline_mode = #tpu.pipeline_mode<synchronous>, transform_indices = @transform_0, window_bounds = array<i64: 16, 27>}, {transform_indices = @transform_1, window_bounds = array<i64: 27, 5248>}, {pipeline_mode = #tpu.pipeline_mode<synchronous>, transform_indices = @transform_2, window_bounds = array<i64: 16, 1>}, {transform_indices = @transform_3, window_bounds = array<i64: 16, 5248>}]} {
    %c0 = arith.constant 0 : index
    %c0_0 = arith.constant 0 : index
    %0 = vector.load %arg1[%c0, %c0_0] : memref<16x27xbf16, #tpu.memory_space<vmem>>, vector<16x27xbf16>
    %c0_1 = arith.constant 0 : index
    %c0_2 = arith.constant 0 : index
    %1 = vector.load %arg2[%c0_1, %c0_2] : memref<27x5248xbf16, #tpu.memory_space<vmem>>, vector<27x5248xbf16>
    %cst = arith.constant dense<0.000000e+00> : vector<16x5248xf32>
    %2 = tpu.matmul %0, %1, %cst {dimension_numbers = #tpu.dot_dimension_numbers<[1], [0], [0], [1], [0, 0, 1, 1], [], []>} : vector<16x27xbf16>, vector<27x5248xbf16>, vector<16x5248xf32> -> vector<16x5248xf32>
    %c0_3 = arith.constant 0 : index
    %c0_4 = arith.constant 0 : index
    %3 = vector.load %arg3[%c0_3, %c0_4] : memref<16x1xf32, #tpu.memory_space<vmem>>, vector<16x1xf32>
    %4 = vector.broadcast %3 : vector<16x1xf32> to vector<16x5248xf32>
    %5 = arith.addf %2, %4 : vector<16x5248xf32>
    %cst_5 = arith.constant 0.000000e+00 : f32
    %6 = vector.broadcast %cst_5 : f32 to vector<16x5248xf32>
    %7 = arith.maximumf %5, %6 : vector<16x5248xf32>
    %cst_6 = arith.constant 6.000000e+00 : f32
    %8 = vector.broadcast %cst_6 : f32 to vector<16x5248xf32>
    %9 = arith.minimumf %7, %8 : vector<16x5248xf32>
    %c0_7 = arith.constant 0 : index
    %c0_8 = arith.constant 0 : index
    %10 = vector.load %arg4[%c0_7, %c0_8] : memref<16x5248xf32, #tpu.memory_space<vmem>>, vector<16x5248xf32>
    tpu.vector_store %arg4[%c0_7, %c0_8], %9 {strides = array<i32>} : memref<16x5248xf32, #tpu.memory_space<vmem>>, vector<16x5248xf32>,
    return
  }
  func.func @transform_0(%arg0: i32) -> (i32, i32) {
    %c0_i32 = arith.constant 0 : i32
    %c0_i32_0 = arith.constant 0 : i32
    %c0_i32_1 = arith.constant 0 : i32
    return %c0_i32, %c0_i32_0 : i32, i32
  }
  func.func @transform_1(%arg0: i32) -> (i32, i32) {
    %c0_i32 = arith.constant 0 : i32
    %c0_i32_0 = arith.constant 0 : i32
    return %c0_i32, %arg0 : i32, i32
  }
  func.func @transform_2(%arg0: i32) -> (i32, i32) {
    %c0_i32 = arith.constant 0 : i32
    %c0_i32_0 = arith.constant 0 : i32
    %c0_i32_1 = arith.constant 0 : i32
    return %c0_i32, %c0_i32_0 : i32, i32
  }
  func.func @transform_3(%arg0: i32) -> (i32, i32) {
    %c0_i32 = arith.constant 0 : i32
    %c0_i32_0 = arith.constant 0 : i32
    return %c0_i32, %arg0 : i32, i32
  }
}

</mosaic_0001>

<llo_original>
// kernel: conv2d_relu6.1
$region0: #{conv2d_relu6.1}
  #allocation0 [shape = 'u32[]', space=smem, size = 0x4, offset = 0x4, fixed_abs, tag = 'smem constant byte address 0x4 - core index']
  #allocation1 [shape = 'u32[72,128]{1,0:T(1,128)}', space=vmem, size = 0x9000, scoped, tag = 'internal scratch']
  %s0 = inlined_call_operand.vmem [shape: bf16[16,27], index: 0, kind: input, shape index: {}]
  %s1 = inlined_call_operand.vmem [shape: bf16[27,10340], index: 1, kind: input, shape index: {}]
  %s2 = inlined_call_operand.vmem [shape: f32[16,1], index: 2, kind: input, shape index: {}]
  %s3 = inlined_call_operand.vmem [shape: f32[16,10340], index: 3, kind: output, shape index: {}]
  %s4 = sld [smem:[#allocation0]]
  $region173: #{conv2d_relu6.1} parent=0
    _
  %s6 = ssub.s32 1, %s4
  %s7 = scalar_select 0, %s6, %s4
  $region1: #{conv2d_relu6.1} parent=0
    #allocation2 [shape = 'u8[671744]{0}', space=vmem, size = 0xa4000, scoped, tag = 'input window, operand 1']
    #allocation3 [shape = 'u8[671744]{0}', space=vmem, size = 0xa4000, scoped, tag = 'output window, operand 0']
    loop: start=0, step=1, limit=4
    $region2: #{conv2d_relu6.1} parent=1 // loop_pre_header
      _
    $region3: #{conv2d_relu6.1} parent=1 // loop_header
      %s9 = sphi 0, %s13
      %p10 = scmp.ge.s32.totalorder %s9, 4
      %s17 = sphi 0, %s17
      %s19 = sphi 0, %s17
      %s20 = sphi 0, %s19
      %s34 = sphi 0, %s20
      %s40 = sphi 0, %s42
      %s43 = sphi 0, %s40
      %s44 = sphi 0, %s43
      %s60 = sphi 0, %s44
      %s64 = sphi 0, %s64
      %s66 = sphi 0, %s64
      %s67 = sphi 0, %s66
      %s81 = sphi 0, %s67
      %s87 = sphi 0, %s89
      %s90 = sphi 0, %s87
      %s91 = sphi 0, %s90
      %s107 = sphi 0, %s91
    $region4: #{conv2d_relu6.1} parent=1 // loop_header_branch
      %12 = sbr.rel (%p10) target = $region8
    $region5: #{conv2d_relu6.1} parent=1 // loop_body
      %s14 = ssub.s32 %s9, 1
      %s15 = ssub.s32 %s9, 2
      %s16 = sadd.s32 %s9, 1
      %s18 = sadd.s32 %s17, 1
      %p21 = scmp.eq.s32.totalorder %s9, 1
      %p22 = scmp.ne.s32.totalorder %s17, %s19
      %p23 = scmp.eq.s32.totalorder %s9, 0
      %p24 = por %p22, %p23
      %p25 = scmp.ne.s32.totalorder %s17, %s19
      %p26 = scmp.eq.s32.totalorder %s14, 1
      %p27 = por %p25, %p26
      %p28 = scmp.ne.s32.totalorder %s19, %s20
      %p29 = scmp.eq.s32.totalorder %s14, 0
      %p30 = por %p28, %p29
      %p31 = scmp.ne.s32.totalorder %s19, %s20
      %p32 = scmp.eq.s32.totalorder %s15, 1
      %p33 = por %p31, %p32
      %p35 = scmp.ne.s32.totalorder %s20, %s34
      %p36 = scmp.eq.s32.totalorder %s15, 0
      %p37 = por %p35, %p36
      %s38 = ssub.s32 %s9, %s16
      %p39 = scmp.eq.s32.totalorder %s38, 0
      %s41 = sadd.s32 %s40, 1
      %s42 = scalar_select %p39, %s40, %s41
      %p45 = pneg %p39
      %p46 = scmp.eq.s32.totalorder %s9, 1
      %p47 = por %p45, %p46
      %p48 = scmp.ne.s32.totalorder %s40, %s43
      %p49 = scmp.eq.s32.totalorder %s9, 0
      %p50 = por %p48, %p49
      %p51 = scmp.ne.s32.totalorder %s40, %s43
      %p52 = scmp.eq.s32.totalorder %s14, 1
      %p53 = por %p51, %p52
      %p54 = scmp.ne.s32.totalorder %s43, %s44
      %p55 = scmp.eq.s32.totalorder %s14, 0
      %p56 = por %p54, %p55
      %p57 = scmp.ne.s32.totalorder %s43, %s44
      %p58 = scmp.eq.s32.totalorder %s15, 1
      %p59 = por %p57, %p58
      %p61 = scmp.ne.s32.totalorder %s44, %s60
      %p62 = scmp.eq.s32.totalorder %s15, 0
      %p63 = por %p61, %p62
      %s65 = sadd.s32 %s64, 1
      %p68 = scmp.eq.s32.totalorder %s9, 1
      %p69 = scmp.ne.s32.totalorder %s64, %s66
      %p70 = scmp.eq.s32.totalorder %s9, 0
      %p71 = por %p69, %p70
      %p72 = scmp.ne.s32.totalorder %s64, %s66
      %p73 = scmp.eq.s32.totalorder %s14, 1
      %p74 = por %p72, %p73
      %p75 = scmp.ne.s32.totalorder %s66, %s67
      %p76 = scmp.eq.s32.totalorder %s14, 0
      %p77 = por %p75, %p76
      %p78 = scmp.ne.s32.totalorder %s66, %s67
      %p79 = scmp.eq.s32.totalorder %s15, 1
      %p80 = por %p78, %p79
      %p82 = scmp.ne.s32.totalorder %s67, %s81
      %p83 = scmp.eq.s32.totalorder %s15, 0
      %p84 = por %p82, %p83
      %s85 = ssub.s32 %s9, %s16
      %p86 = scmp.eq.s32.totalorder %s85, 0
      %s88 = sadd.s32 %s87, 1
      %s89 = scalar_select %p86, %s87, %s88
      %p92 = pneg %p86
      %p93 = scmp.eq.s32.totalorder %s9, 1
      %p94 = por %p92, %p93
      %p95 = scmp.ne.s32.totalorder %s87, %s90
      %p96 = scmp.eq.s32.totalorder %s9, 0
      %p97 = por %p95, %p96
      %p98 = scmp.ne.s32.totalorder %s87, %s90
      %p99 = scmp.eq.s32.totalorder %s14, 1
      %p100 = por %p98, %p99
      %p101 = scmp.ne.s32.totalorder %s90, %s91
      %p102 = scmp.eq.s32.totalorder %s14, 0
      %p103 = por %p101, %p102
      %p104 = scmp.ne.s32.totalorder %s90, %s91
      %p105 = scmp.eq.s32.totalorder %s15, 1
      %p106 = por %p104, %p105
      %p108 = scmp.ne.s32.totalorder %s91, %s107
      %p109 = scmp.eq.s32.totalorder %s15, 0
      %p110 = por %p108, %p109
      %p111 = scmp.le.s32.totalorder 1, %s9
      %p112 = scmp.lt.s32.totalorder %s9, 3
      %p113 = pnand %p111, %p112
      %p114 = pneg %p113
      // Predicated region
      $region9: #{conv2d_relu6.1} parent=5 // pred_check
        _
      $region10: #{conv2d_relu6.1} parent=5 // pred_check_branch
        %116 = sbr.rel (%p113) target = $region12
      $region11: #{conv2d_relu6.1} parent=5 // pred_region
        %s117 = ssub.s32 %s9, 1
        // Predicated region
        $region13: #{conv2d_relu6.1} parent=11 // pred_check
          %p118 = pneg %p30
        $region14: #{conv2d_relu6.1} parent=11 // pred_check_branch
          %120 = sbr.rel (%p118) target = $region16
        $region15: #{conv2d_relu6.1} parent=11 // pred_region
          _
        $region16: #{conv2d_relu6.1} parent=11 // pred_fallthru
          _
        // Predicated region
        $region17: #{conv2d_relu6.1} parent=11 // pred_check
          %p121 = pneg %p77
        $region18: #{conv2d_relu6.1} parent=11 // pred_check_branch
          %123 = sbr.rel (%p121) target = $region20
        $region19: #{conv2d_relu6.1} parent=11 // pred_region
          _
        $region20: #{conv2d_relu6.1} parent=11 // pred_fallthru
          _
      $region12: #{conv2d_relu6.1} parent=5 // pred_fallthru
        _
      %p124 = scmp.lt.s32.totalorder %s9, 2
      // Predicated region
      $region21: #{conv2d_relu6.1} parent=5 // pred_check
        %p125 = pneg %p124
      $region22: #{conv2d_relu6.1} parent=5 // pred_check_branch
        %127 = sbr.rel (%p125) target = $region24
      $region23: #{conv2d_relu6.1} parent=5 // pred_region
        // Predicated region
        $region25: #{conv2d_relu6.1} parent=23 // pred_check
          %p128 = pneg %p50
        $region26: #{conv2d_relu6.1} parent=23 // pred_check_branch
          %130 = sbr.rel (%p128) target = $region28
        $region27: #{conv2d_relu6.1} parent=23 // pred_region
          %s131 = sand.u32 %s40, 1
          %s132 = sand.u32 %s40, 1
          %s133 = smul.addr %s132, 656
          %s134 = scalar_lea.vmem [#allocation2], %s133
          %s135 = smul.u32 41, %s9
          %s136 = ssub.s32 81, %s135
          %p137 = scmp.lt.s32.totalorder %s136, 41
          %s138 = scalar_select %p137, %s136, 41
          %s139 = smul.u32 16, %s138
          %p140 = scmp.ne.s32.totalorder 0, %s139
          %s141 = smul.addr %s135, 4
          %s142 = scalar_lea.vmem %s1, %s141
          %s143 = smul.u32 %s138, 4
          // Predicated region
          $region29: #{conv2d_relu6.1} parent=27 // pred_check
            %p144 = pneg %p140
          $region30: #{conv2d_relu6.1} parent=27 // pred_check_branch
            %146 = sbr.rel (%p144) target = $region32
          $region31: #{conv2d_relu6.1} parent=27 // pred_region
            %p147 = scmp.lt.u32.totalorder %s143, 8
            %p148 = pneg %p147
            // Predicated region
            $region33: #{conv2d_relu6.1} parent=31 // pred_check
              _
            $region34: #{conv2d_relu6.1} parent=31 // pred_check_branch
              %150 = sbr.rel (%p147) target = $region36
            $region35: #{conv2d_relu6.1} parent=31 // pred_region
              %s172 = sand.u32 %s143, 7
              %p173 = scmp.eq.s32.totalorder %s172, 0
              // Predicated region
              $region48: #{conv2d_relu6.1} parent=35 // pred_check
                %p174 = pneg %p173
              $region49: #{conv2d_relu6.1} parent=35 // pred_check_branch
                %176 = sbr.rel (%p174) target = $region51
              $region50: #{conv2d_relu6.1} parent=35 // pred_region
                %s177 = sshrl.u32 %s143, 3
                %s178 = sshrl.u32 %s177, 3
                // While loop
                $region52: #{conv2d_relu6.1} parent=50 // loop_pre_header
                  _
                $region53: #{conv2d_relu6.1} parent=50 // loop_header
                  %s180 = sphi 0, %s182
                  %p181 = scmp.ge.s32.totalorder %s180, %s178
                  %s185 = sphi 0, %s254
                  %s186 = sphi %s142, %s257
                  %s187 = sphi %s134, %s258
                $region54: #{conv2d_relu6.1} parent=50 // loop_header_branch
                  %184 = sbr.rel (%p181) target = $region58
                $region55: #{conv2d_relu6.1} parent=50 // loop_body
                  %v188 = vld [vmem:[%s186] sm:$0xff]
                  %189 = vst [vmem:[%s187] sm:$0xff] %v188
                  %v190 = vld [vmem:[%s186 + $0x8] sm:$0xff]
                  %191 = vst [vmem:[%s187 + $0x8] sm:$0xff] %v190
                  %v192 = vld [vmem:[%s186 + $0x10] sm:$0xff]
                  %193 = vst [vmem:[%s187 + $0x10] sm:$0xff] %v192
                  %v194 = vld [vmem:[%s186 + $0x18] sm:$0xff]
                  %195 = vst [vmem:[%s187 + $0x18] sm:$0xff] %v194
                  %v196 = vld [vmem:[%s186 + $0x20] sm:$0xff]
                  %197 = vst [vmem:[%s187 + $0x20] sm:$0xff] %v196
                  %v198 = vld [vmem:[%s186 + $0x28] sm:$0xff]
                  %199 = vst [vmem:[%s187 + $0x28] sm:$0xff] %v198
                  %v200 = vld [vmem:[%s186 + $0x30] sm:$0xff]
                  %201 = vst [vmem:[%s187 + $0x30] sm:$0xff] %v200
                  %v202 = vld [vmem:[%s186 + $0x38] sm:$0xff]
                  %203 = vst [vmem:[%s187 + $0x38] sm:$0xff] %v202
                  %v204 = vld [vmem:[%s186 + $0x144] sm:$0xff]
                  %205 = vst [vmem:[%s187 + $0xa4] sm:$0xff] %v204
                  %v206 = vld [vmem:[%s186 + $0x14c] sm:$0xff]
                  %207 = vst [vmem:[%s187 + $0xac] sm:$0xff] %v206
                  %v208 = vld [vmem:[%s186 + $0x154] sm:$0xff]
                  %209 = vst [vmem:[%s187 + $0xb4] sm:$0xff] %v208
                  %v210 = vld [vmem:[%s186 + $0x15c] sm:$0xff]
                  %211 = vst [vmem:[%s187 + $0xbc] sm:$0xff] %v210
                  %v212 = vld [vmem:[%s186 + $0x164] sm:$0xff]
                  %213 = vst [vmem:[%s187 + $0xc4] sm:$0xff] %v212
                  %v214 = vld [vmem:[%s186 + $0x16c] sm:$0xff]
                  %215 = vst [vmem:[%s187 + $0xcc] sm:$0xff] %v214
                  %v216 = vld [vmem:[%s186 + $0x174] sm:$0xff]
                  %217 = vst [vmem:[%s187 + $0xd4] sm:$0xff] %v216
                  %v218 = vld [vmem:[%s186 + $0x17c] sm:$0xff]
                  %219 = vst [vmem:[%s187 + $0xdc] sm:$0xff] %v218
                  %v220 = vld [vmem:[%s186 + $0x288] sm:$0xff]
                  %221 = vst [vmem:[%s187 + $0x148] sm:$0xff] %v220
                  %v222 = vld [vmem:[%s186 + $0x290] sm:$0xff]
                  %223 = vst [vmem:[%s187 + $0x150] sm:$0xff] %v222
                  %v224 = vld [vmem:[%s186 + $0x298] sm:$0xff]
                  %225 = vst [vmem:[%s187 + $0x158] sm:$0xff] %v224
                  %v226 = vld [vmem:[%s186 + $0x2a0] sm:$0xff]
                  %227 = vst [vmem:[%s187 + $0x160] sm:$0xff] %v226
                  %v228 = vld [vmem:[%s186 + $0x2a8] sm:$0xff]
                  %229 = vst [vmem:[%s187 + $0x168] sm:$0xff] %v228
                  %v230 = vld [vmem:[%s186 + $0x2b0] sm:$0xff]
                  %231 = vst [vmem:[%s187 + $0x170] sm:$0xff] %v230
                  %v232 = vld [vmem:[%s186 + $0x2b8] sm:$0xff]
                  %233 = vst [vmem:[%s187 + $0x178] sm:$0xff] %v232
                  %v234 = vld [vmem:[%s186 + $0x2c0] sm:$0xff]
                  %235 = vst [vmem:[%s187 + $0x180] sm:$0xff] %v234
                  %v236 = vld [vmem:[%s186 + $0x3cc] sm:$0xff]
                  %237 = vst [vmem:[%s187 + $0x1ec] sm:$0xff] %v236
                  %v238 = vld [vmem:[%s186 + $0x3d4] sm:$0xff]
                  %239 = vst [vmem:[%s187 + $0x1f4] sm:$0xff] %v238
                  %v240 = vld [vmem:[%s186 + $0x3dc] sm:$0xff]
                  %241 = vst [vmem:[%s187 + $0x1fc] sm:$0xff] %v240
                  %v242 = vld [vmem:[%s186 + $0x3e4] sm:$0xff]
                  %243 = vst [vmem:[%s187 + $0x204] sm:$0xff] %v242
                  %v244 = vld [vmem:[%s186 + $0x3ec] sm:$0xff]
                  %245 = vst [vmem:[%s187 + $0x20c] sm:$0xff] %v244
                  %v246 = vld [vmem:[%s186 + $0x3f4] sm:$0xff]
                  %247 = vst [vmem:[%s187 + $0x214] sm:$0xff] %v246
                  %v248 = vld [vmem:[%s186 + $0x3fc] sm:$0xff]
                  %249 = vst [vmem:[%s187 + $0x21c] sm:$0xff] %v248
                  %v250 = vld [vmem:[%s186 + $0x404] sm:$0xff]
                  %251 = vst [vmem:[%s187 + $0x224] sm:$0xff] %v250
                  %s252 = sadd.s32 1, %s185
                  %p253 = scmp.ge.s32.totalorder %s252, %s178
                  %s254 = scalar_select %p253, 0, %s252
                  %s255 = smul.u32 %s254, 64
                  %s256 = smul.u32 %s254, 64
                  %s257 = scalar_lea.vmem %s142, %s255
                  %s258 = scalar_lea.vmem %s134, %s256 [#allocation2]
                $region56: #{conv2d_relu6.1} parent=50 // loop_footer
                  %s182 = sadd.s32 %s180, 1
                $region57: #{conv2d_relu6.1} parent=50 // loop_footer_branch
                  %179 = sbr.rel target = $region53
                $region58: #{conv2d_relu6.1} parent=50 // loop_exit
                  _
                %s259 = sshrl.u32 %s177, 3
                %s260 = sand.u32 %s177, 7
                %s261 = smul.u32 %s259, 8
                %s262 = smul.u32 8, %s261
                %s263 = scalar_lea.vmem %s142, %s262
                %s264 = smul.u32 8, %s261
                %s265 = scalar_lea.vmem %s134, %s264 [#allocation2]
                // While loop
                $region59: #{conv2d_relu6.1} parent=50 // loop_pre_header
                  _
                $region60: #{conv2d_relu6.1} parent=50 // loop_header
                  %s267 = sphi 0, %s269
                  %p268 = scmp.ge.s32.totalorder %s267, %s260
                  %s272 = sphi 0, %s285
                  %s273 = sphi %s263, %s288
                  %s274 = sphi %s265, %s289
                $region61: #{conv2d_relu6.1} parent=50 // loop_header_branch
                  %271 = sbr.rel (%p268) target = $region65
                $region62: #{conv2d_relu6.1} parent=50 // loop_body
                  %v275 = vld [vmem:[%s273] sm:$0xff]
                  %276 = vst [vmem:[%s274] sm:$0xff] %v275
                  %v277 = vld [vmem:[%s273 + $0x144] sm:$0xff]
                  %278 = vst [vmem:[%s274 + $0xa4] sm:$0xff] %v277
                  %v279 = vld [vmem:[%s273 + $0x288] sm:$0xff]
                  %280 = vst [vmem:[%s274 + $0x148] sm:$0xff] %v279
                  %v281 = vld [vmem:[%s273 + $0x3cc] sm:$0xff]
                  %282 = vst [vmem:[%s274 + $0x1ec] sm:$0xff] %v281
                  %s283 = sadd.s32 1, %s272
                  %p284 = scmp.ge.s32.totalorder %s283, %s260
                  %s285 = scalar_select %p284, 0, %s283
                  %s286 = smul.u32 %s285, 8
                  %s287 = smul.u32 %s285, 8
                  %s288 = scalar_lea.vmem %s263, %s286
                  %s289 = scalar_lea.vmem %s265, %s287 [#allocation2]
                $region63: #{conv2d_relu6.1} parent=50 // loop_footer
                  %s269 = sadd.s32 %s267, 1
                $region64: #{conv2d_relu6.1} parent=50 // loop_footer_branch
                  %266 = sbr.rel target = $region60
                $region65: #{conv2d_relu6.1} parent=50 // loop_exit
                  _
              $region51: #{conv2d_relu6.1} parent=35 // pred_fallthru
                _
              %p290 = pneg %p173
              // Predicated region
              $region66: #{conv2d_relu6.1} parent=35 // pred_check
                _
              $region67: #{conv2d_relu6.1} parent=35 // pred_check_branch
                %292 = sbr.rel (%p173) target = $region69
              $region68: #{conv2d_relu6.1} parent=35 // pred_region
                %s293 = sand.u32 %s143, 7
                %s294 = ssub.s32 %s143, %s293
                %s295 = scalar_lea.vmem %s142, %s294
                %s296 = ssub.s32 %s143, %s293
                %s297 = scalar_lea.vmem %s134, %s296 [#allocation2]
                %s298 = sshrl.u32 %s143, 3
                %s299 = sshrl.u32 %s298, 3
                // While loop
                $region70: #{conv2d_relu6.1} parent=68 // loop_pre_header
                  _
                $region71: #{conv2d_relu6.1} parent=68 // loop_header
                  %s301 = sphi 0, %s303
                  %p302 = scmp.ge.s32.totalorder %s301, %s299
                  %s306 = sphi 0, %s375
                  %s307 = sphi %s142, %s378
                  %s308 = sphi %s134, %s379
                $region72: #{conv2d_relu6.1} parent=68 // loop_header_branch
                  %305 = sbr.rel (%p302) target = $region76
                $region73: #{conv2d_relu6.1} parent=68 // loop_body
                  %v309 = vld [vmem:[%s307] sm:$0xff]
                  %310 = vst [vmem:[%s308] sm:$0xff] %v309
                  %v311 = vld [vmem:[%s307 + $0x8] sm:$0xff]
                  %312 = vst [vmem:[%s308 + $0x8] sm:$0xff] %v311
                  %v313 = vld [vmem:[%s307 + $0x10] sm:$0xff]
                  %314 = vst [vmem:[%s308 + $0x10] sm:$0xff] %v313
                  %v315 = vld [vmem:[%s307 + $0x18] sm:$0xff]
                  %316 = vst [vmem:[%s308 + $0x18] sm:$0xff] %v315
                  %v317 = vld [vmem:[%s307 + $0x20] sm:$0xff]
                  %318 = vst [vmem:[%s308 + $0x20] sm:$0xff] %v317
                  %v319 = vld [vmem:[%s307 + $0x28] sm:$0xff]
                  %320 = vst [vmem:[%s308 + $0x28] sm:$0xff] %v319
                  %v321 = vld [vmem:[%s307 + $0x30] sm:$0xff]
                  %322 = vst [vmem:[%s308 + $0x30] sm:$0xff] %v321
                  %v323 = vld [vmem:[%s307 + $0x38] sm:$0xff]
                  %324 = vst [vmem:[%s308 + $0x38] sm:$0xff] %v323
                  %v325 = vld [vmem:[%s307 + $0x144] sm:$0xff]
                  %326 = vst [vmem:[%s308 + $0xa4] sm:$0xff] %v325
                  %v327 = vld [vmem:[%s307 + $0x14c] sm:$0xff]
                  %328 = vst [vmem:[%s308 + $0xac] sm:$0xff] %v327
                  %v329 = vld [vmem:[%s307 + $0x154] sm:$0xff]
                  %330 = vst [vmem:[%s308 + $0xb4] sm:$0xff] %v329
                  %v331 = vld [vmem:[%s307 + $0x15c] sm:$0xff]
                  %332 = vst [vmem:[%s308 + $0xbc] sm:$0xff] %v331
                  %v333 = vld [vmem:[%s307 + $0x164] sm:$0xff]
                  %334 = vst [vmem:[%s308 + $0xc4] sm:$0xff] %v333
                  %v335 = vld [vmem:[%s307 + $0x16c] sm:$0xff]
                  %336 = vst [vmem:[%s308 + $0xcc] sm:$0xff] %v335
                  %v337 = vld [vmem:[%s307 + $0x174] sm:$0xff]
                  %338 = vst [vmem:[%s308 + $0xd4] sm:$0xff] %v337
                  %v339 = vld [vmem:[%s307 + $0x17c] sm:$0xff]
                  %340 = vst [vmem:[%s308 + $0xdc] sm:$0xff] %v339
                  %v341 = vld [vmem:[%s307 + $0x288] sm:$0xff]
                  %342 = vst [vmem:[%s308 + $0x148] sm:$0xff] %v341
                  %v343 = vld [vmem:[%s307 + $0x290] sm:$0xff]
                  %344 = vst [vmem:[%s308 + $0x150] sm:$0xff] %v343
                  %v345 = vld [vmem:[%s307 + $0x298] sm:$0xff]
                  %346 = vst [vmem:[%s308 + $0x158] sm:$0xff] %v345
                  %v347 = vld [vmem:[%s307 + $0x2a0] sm:$0xff]
                  %348 = vst [vmem:[%s308 + $0x160] sm:$0xff] %v347
                  %v349 = vld [vmem:[%s307 + $0x2a8] sm:$0xff]
                  %350 = vst [vmem:[%s308 + $0x168] sm:$0xff] %v349
                  %v351 = vld [vmem:[%s307 + $0x2b0] sm:$0xff]
                  %352 = vst [vmem:[%s308 + $0x170] sm:$0xff] %v351
                  %v353 = vld [vmem:[%s307 + $0x2b8] sm:$0xff]
                  %354 = vst [vmem:[%s308 + $0x178] sm:$0xff] %v353
                  %v355 = vld [vmem:[%s307 + $0x2c0] sm:$0xff]
                  %356 = vst [vmem:[%s308 + $0x180] sm:$0xff] %v355
                  %v357 = vld [vmem:[%s307 + $0x3cc] sm:$0xff]
                  %358 = vst [vmem:[%s308 + $0x1ec] sm:$0xff] %v357
                  %v359 = vld [vmem:[%s307 + $0x3d4] sm:$0xff]
                  %360 = vst [vmem:[%s308 + $0x1f4] sm:$0xff] %v359
                  %v361 = vld [vmem:[%s307 + $0x3dc] sm:$0xff]
                  %362 = vst [vmem:[%s308 + $0x1fc] sm:$0xff] %v361
                  %v363 = vld [vmem:[%s307 + $0x3e4] sm:$0xff]
                  %364 = vst [vmem:[%s308 + $0x204] sm:$0xff] %v363
                  %v365 = vld [vmem:[%s307 + $0x3ec] sm:$0xff]
                  %366 = vst [vmem:[%s308 + $0x20c] sm:$0xff] %v365
                  %v367 = vld [vmem:[%s307 + $0x3f4] sm:$0xff]
                  %368 = vst [vmem:[%s308 + $0x214] sm:$0xff] %v367
                  %v369 = vld [vmem:[%s307 + $0x3fc] sm:$0xff]
                  %370 = vst [vmem:[%s308 + $0x21c] sm:$0xff] %v369
                  %v371 = vld [vmem:[%s307 + $0x404] sm:$0xff]
                  %372 = vst [vmem:[%s308 + $0x224] sm:$0xff] %v371
                  %s373 = sadd.s32 1, %s306
                  %p374 = scmp.ge.s32.totalorder %s373, %s299
                  %s375 = scalar_select %p374, 0, %s373
                  %s376 = smul.u32 %s375, 64
                  %s377 = smul.u32 %s375, 64
                  %s378 = scalar_lea.vmem %s142, %s376
                  %s379 = scalar_lea.vmem %s134, %s377 [#allocation2]
                $region74: #{conv2d_relu6.1} parent=68 // loop_footer
                  %s303 = sadd.s32 %s301, 1
                $region75: #{conv2d_relu6.1} parent=68 // loop_footer_branch
                  %300 = sbr.rel target = $region71
                $region76: #{conv2d_relu6.1} parent=68 // loop_exit
                  _
                %s380 = sshrl.u32 %s298, 3
                %s381 = sand.u32 %s298, 7
                %s382 = smul.u32 %s380, 8
                %s383 = smul.u32 8, %s382
                %s384 = scalar_lea.vmem %s142, %s383
                %s385 = smul.u32 8, %s382
                %s386 = scalar_lea.vmem %s134, %s385 [#allocation2]
                // While loop
                $region77: #{conv2d_relu6.1} parent=68 // loop_pre_header
                  _
                $region78: #{conv2d_relu6.1} parent=68 // loop_header
                  %s388 = sphi 0, %s390
                  %p389 = scmp.ge.s32.totalorder %s388, %s381
                  %s393 = sphi 0, %s406
                  %s394 = sphi %s384, %s409
                  %s395 = sphi %s386, %s410
                $region79: #{conv2d_relu6.1} parent=68 // loop_header_branch
                  %392 = sbr.rel (%p389) target = $region83
                $region80: #{conv2d_relu6.1} parent=68 // loop_body
                  %v396 = vld [vmem:[%s394] sm:$0xff]
                  %397 = vst [vmem:[%s395] sm:$0xff] %v396
                  %v398 = vld [vmem:[%s394 + $0x144] sm:$0xff]
                  %399 = vst [vmem:[%s395 + $0xa4] sm:$0xff] %v398
                  %v400 = vld [vmem:[%s394 + $0x288] sm:$0xff]
                  %401 = vst [vmem:[%s395 + $0x148] sm:$0xff] %v400
                  %v402 = vld [vmem:[%s394 + $0x3cc] sm:$0xff]
                  %403 = vst [vmem:[%s395 + $0x1ec] sm:$0xff] %v402
                  %s404 = sadd.s32 1, %s393
                  %p405 = scmp.ge.s32.totalorder %s404, %s381
                  %s406 = scalar_select %p405, 0, %s404
                  %s407 = smul.u32 %s406, 8
                  %s408 = smul.u32 %s406, 8
                  %s409 = scalar_lea.vmem %s384, %s407
                  %s410 = scalar_lea.vmem %s386, %s408 [#allocation2]
                $region81: #{conv2d_relu6.1} parent=68 // loop_footer
                  %s390 = sadd.s32 %s388, 1
                $region82: #{conv2d_relu6.1} parent=68 // loop_footer_branch
                  %387 = sbr.rel target = $region78
                $region83: #{conv2d_relu6.1} parent=68 // loop_exit
                  _
                %s411 = sshll.u32 1, %s293
                %s412 = ssub.s32 %s411, 1
                loop: start=0, step=1, limit=1
                $region84: #{conv2d_relu6.1} parent=68 // loop_pre_header
                  _
                $region85: #{conv2d_relu6.1} parent=68 // loop_header
                  %s414 = sphi 0, %s418
                  %p415 = scmp.ge.s32.totalorder %s414, 1
                  %s419 = sphi %s295, %s295
                  %s420 = sphi %s297, %s297
                $region86: #{conv2d_relu6.1} parent=68 // loop_header_branch
                  %417 = sbr.rel (%p415) target = $region90
                $region87: #{conv2d_relu6.1} parent=68 // loop_body
                  %v421 = vld [vmem:[%s419] sm:%s412]
                  %422 = vst [vmem:[%s420] sm:%s412] %v421
                  %v423 = vld [vmem:[%s419 + $0x144] sm:%s412]
                  %424 = vst [vmem:[%s420 + $0xa4] sm:%s412] %v423
                  %v425 = vld [vmem:[%s419 + $0x288] sm:%s412]
                  %426 = vst [vmem:[%s420 + $0x148] sm:%s412] %v425
                  %v427 = vld [vmem:[%s419 + $0x3cc] sm:%s412]
                  %428 = vst [vmem:[%s420 + $0x1ec] sm:%s412] %v427
                $region88: #{conv2d_relu6.1} parent=68 // loop_footer
                  %s418 = sadd.s32 1, %s414
                $region89: #{conv2d_relu6.1} parent=68 // loop_footer_branch
                  %413 = sbr.rel target = $region85
                $region90: #{conv2d_relu6.1} parent=68 // loop_exit
                  _
              $region69: #{conv2d_relu6.1} parent=35 // pred_fallthru
                _
            $region36: #{conv2d_relu6.1} parent=31 // pred_fallthru
              _
            // Predicated region
            $region37: #{conv2d_relu6.1} parent=31 // pred_check
              %p151 = pneg %p147
            $region38: #{conv2d_relu6.1} parent=31 // pred_check_branch
              %153 = sbr.rel (%p151) target = $region40
            $region39: #{conv2d_relu6.1} parent=31 // pred_region
              %s154 = sshll.u32 1, %s143
              %s155 = ssub.s32 %s154, 1
              loop: start=0, step=1, limit=1
              $region41: #{conv2d_relu6.1} parent=39 // loop_pre_header
                _
              $region42: #{conv2d_relu6.1} parent=39 // loop_header
                %s157 = sphi 0, %s161
                %p158 = scmp.ge.s32.totalorder %s157, 1
                %s162 = sphi %s142, %s142
                %s163 = sphi %s134, %s134
              $region43: #{conv2d_relu6.1} parent=39 // loop_header_branch
                %160 = sbr.rel (%p158) target = $region47
              $region44: #{conv2d_relu6.1} parent=39 // loop_body
                %v164 = vld [vmem:[%s162] sm:%s155]
                %165 = vst [vmem:[%s163] sm:%s155] %v164
                %v166 = vld [vmem:[%s162 + $0x144] sm:%s155]
                %167 = vst [vmem:[%s163 + $0xa4] sm:%s155] %v166
                %v168 = vld [vmem:[%s162 + $0x288] sm:%s155]
                %169 = vst [vmem:[%s163 + $0x148] sm:%s155] %v168
                %v170 = vld [vmem:[%s162 + $0x3cc] sm:%s155]
                %171 = vst [vmem:[%s163 + $0x1ec] sm:%s155] %v170
              $region45: #{conv2d_relu6.1} parent=39 // loop_footer
                %s161 = sadd.s32 1, %s157
              $region46: #{conv2d_relu6.1} parent=39 // loop_footer_branch
                %156 = sbr.rel target = $region42
              $region47: #{conv2d_relu6.1} parent=39 // loop_exit
                _
            $region40: #{conv2d_relu6.1} parent=31 // pred_fallthru
              _
          $region32: #{conv2d_relu6.1} parent=27 // pred_fallthru
            _
          %429 = vnop
        $region28: #{conv2d_relu6.1} parent=23 // pred_fallthru
          _
      $region24: #{conv2d_relu6.1} parent=5 // pred_fallthru
        _
      %p430 = scmp.le.s32.totalorder 1, %s9
      %p431 = scmp.lt.s32.totalorder %s9, 3
      %p432 = pnand %p430, %p431
      %p433 = pneg %p432
      // Predicated region
      $region91: #{conv2d_relu6.1} parent=5 // pred_check
        _
      $region92: #{conv2d_relu6.1} parent=5 // pred_check_branch
        %435 = sbr.rel (%p432) target = $region94
      $region93: #{conv2d_relu6.1} parent=5 // pred_region
        %s436 = ssub.s32 %s9, 1
        %s437 = sand.u32 %s43, 1
        %s438 = sand.u32 %s43, 1
        %s439 = smul.addr %s438, 656
        %s440 = scalar_lea.vmem [#allocation2], %s439
        // Predicated region
        $region95: #{conv2d_relu6.1} parent=93 // pred_check
          %p441 = pneg %p56
        $region96: #{conv2d_relu6.1} parent=93 // pred_check_branch
          %443 = sbr.rel (%p441) target = $region98
        $region97: #{conv2d_relu6.1} parent=93 // pred_region
          _
        $region98: #{conv2d_relu6.1} parent=93 // pred_fallthru
          _
        %p444 = pneg %p30
        %p445 = pneg %p27
        %s446 = sand.u32 %s43, 1
        %s447 = sand.u32 %s43, 1
        %s448 = smul.addr %s447, 656
        %s449 = scalar_lea.vmem [#allocation2], %s448
        %p450 = pneg %p56
        %p451 = pneg %p53
        %p452 = pneg %p77
        %p453 = pneg %p74
        %p454 = pneg %p103
        %p455 = pneg %p100
        %s456 = sand.u32 %s90, 1
        %s457 = sand.u32 %s90, 1
        %s458 = smul.addr %s457, 656
        %s459 = scalar_lea.vmem [#allocation3], %s458
        %s460 = smul.u32 41, %s14
        %s461 = ssub.s32 81, %s460
        %p462 = scmp.lt.s32.totalorder %s461, 41
        %s463 = scalar_select %p462, %s461, 41
        %s464 = smul.u32 16, %s463
        %s465 = smul.u32 41, %s14
        %s466 = ssub.s32 81, %s465
        %p467 = scmp.lt.s32.totalorder %s466, 41
        %s468 = scalar_select %p467, %s466, 41
        %s469 = smul.u32 16, %s468
        %v471 = vld [vmem:[%s0] sm:$0xf]
        %v472 = vld [vmem:[%s0 + $0x4] sm:$0xf]
        %v473 = vld [vmem:[%s440] sm:$0xff]
        %v474 = vld [vmem:[%s440 + $0x8] sm:$0xff]
        %v475 = vld [vmem:[%s440 + $0x10] sm:$0xff]
        %v476 = vld [vmem:[%s440 + $0x18] sm:$0xff]
        %v477 = vld [vmem:[%s440 + $0x20] sm:$0xff]
        %v478 = vld [vmem:[%s440 + $0x28] sm:$0xff]
        %v479 = vld [vmem:[%s440 + $0x30] sm:$0xff]
        %v480 = vld [vmem:[%s440 + $0x38] sm:$0xff]
        %v481 = vld [vmem:[%s440 + $0x40] sm:$0xff]
        %v482 = vld [vmem:[%s440 + $0x48] sm:$0xff]
        %v483 = vld [vmem:[%s440 + $0x50] sm:$0xff]
        %v484 = vld [vmem:[%s440 + $0x58] sm:$0xff]
        %v485 = vld [vmem:[%s440 + $0x60] sm:$0xff]
        %v486 = vld [vmem:[%s440 + $0x68] sm:$0xff]
        %v487 = vld [vmem:[%s440 + $0x70] sm:$0xff]
        %v488 = vld [vmem:[%s440 + $0x78] sm:$0xff]
        %v489 = vld [vmem:[%s440 + $0x80] sm:$0xff]
        %v490 = vld [vmem:[%s440 + $0x88] sm:$0xff]
        %v491 = vld [vmem:[%s440 + $0x90] sm:$0xff]
        %v492 = vld [vmem:[%s440 + $0x98] sm:$0xff]
        %v493 = vld [vmem:[%s440 + $0xa0] sm:$0xf]
        %v494 = vld [vmem:[%s440 + $0xa4] sm:$0xff]
        %v495 = vld [vmem:[%s440 + $0xac] sm:$0xff]
        %v496 = vld [vmem:[%s440 + $0xb4] sm:$0xff]
        %v497 = vld [vmem:[%s440 + $0xbc] sm:$0xff]
        %v498 = vld [vmem:[%s440 + $0xc4] sm:$0xff]
        %v499 = vld [vmem:[%s440 + $0xcc] sm:$0xff]
        %v500 = vld [vmem:[%s440 + $0xd4] sm:$0xff]
        %v501 = vld [vmem:[%s440 + $0xdc] sm:$0xff]
        %v502 = vld [vmem:[%s440 + $0xe4] sm:$0xff]
        %v503 = vld [vmem:[%s440 + $0xec] sm:$0xff]
        %v504 = vld [vmem:[%s440 + $0xf4] sm:$0xff]
        %v505 = vld [vmem:[%s440 + $0xfc] sm:$0xff]
        %v506 = vld [vmem:[%s440 + $0x104] sm:$0xff]
        %v507 = vld [vmem:[%s440 + $0x10c] sm:$0xff]
        %v508 = vld [vmem:[%s440 + $0x114] sm:$0xff]
        %v509 = vld [vmem:[%s440 + $0x11c] sm:$0xff]
        %v510 = vld [vmem:[%s440 + $0x124] sm:$0xff]
        %v511 = vld [vmem:[%s440 + $0x12c] sm:$0xff]
        %v512 = vld [vmem:[%s440 + $0x134] sm:$0xff]
        %v513 = vld [vmem:[%s440 + $0x13c] sm:$0xff]
        %v514 = vld [vmem:[%s440 + $0x144] sm:$0xf]
        %v515 = vld [vmem:[%s440 + $0x148] sm:$0xff]
        %v516 = vld [vmem:[%s440 + $0x150] sm:$0xff]
        %v517 = vld [vmem:[%s440 + $0x158] sm:$0xff]
        %v518 = vld [vmem:[%s440 + $0x160] sm:$0xff]
        %v519 = vld [vmem:[%s440 + $0x168] sm:$0xff]
        %v520 = vld [vmem:[%s440 + $0x170] sm:$0xff]
        %v521 = vld [vmem:[%s440 + $0x178] sm:$0xff]
        %v522 = vld [vmem:[%s440 + $0x180] sm:$0xff]
        %v523 = vld [vmem:[%s440 + $0x188] sm:$0xff]
        %v524 = vld [vmem:[%s440 + $0x190] sm:$0xff]
        %v525 = vld [vmem:[%s440 + $0x198] sm:$0xff]
        %v526 = vld [vmem:[%s440 + $0x1a0] sm:$0xff]
        %v527 = vld [vmem:[%s440 + $0x1a8] sm:$0xff]
        %v528 = vld [vmem:[%s440 + $0x1b0] sm:$0xff]
        %v529 = vld [vmem:[%s440 + $0x1b8] sm:$0xff]
        %v530 = vld [vmem:[%s440 + $0x1c0] sm:$0xff]
        %v531 = vld [vmem:[%s440 + $0x1c8] sm:$0xff]
        %v532 = vld [vmem:[%s440 + $0x1d0] sm:$0xff]
        %v533 = vld [vmem:[%s440 + $0x1d8] sm:$0xff]
        %v534 = vld [vmem:[%s440 + $0x1e0] sm:$0xff]
        %v535 = vld [vmem:[%s440 + $0x1e8] sm:$0xf]
        %v536 = vld [vmem:[%s440 + $0x1ec] sm:$0x33]
        %v537 = vld [vmem:[%s440 + $0x1f4] sm:$0x33]
        %v538 = vld [vmem:[%s440 + $0x1fc] sm:$0x33]
        %v539 = vld [vmem:[%s440 + $0x204] sm:$0x33]
        %v540 = vld [vmem:[%s440 + $0x20c] sm:$0x33]
        %v541 = vld [vmem:[%s440 + $0x214] sm:$0x33]
        %v542 = vld [vmem:[%s440 + $0x21c] sm:$0x33]
        %v543 = vld [vmem:[%s440 + $0x224] sm:$0x33]
        %v544 = vld [vmem:[%s440 + $0x22c] sm:$0x33]
        %v545 = vld [vmem:[%s440 + $0x234] sm:$0x33]
        %v546 = vld [vmem:[%s440 + $0x23c] sm:$0x33]
        %v547 = vld [vmem:[%s440 + $0x244] sm:$0x33]
        %v548 = vld [vmem:[%s440 + $0x24c] sm:$0x33]
        %v549 = vld [vmem:[%s440 + $0x254] sm:$0x33]
        %v550 = vld [vmem:[%s440 + $0x25c] sm:$0x33]
        %v551 = vld [vmem:[%s440 + $0x264] sm:$0x33]
        %v552 = vld [vmem:[%s440 + $0x26c] sm:$0x33]
        %v553 = vld [vmem:[%s440 + $0x274] sm:$0x33]
        %v554 = vld [vmem:[%s440 + $0x27c] sm:$0x33]
        %v555 = vld [vmem:[%s440 + $0x284] sm:$0x33]
        %v556 = vld [vmem:[%s440 + $0x28c] sm:$0x3]
        %v557 = vld [vmem:[%s2] sm:$0xff]
        %v558 = vld [vmem:[%s2 + $0x8] sm:$0xff]
        %560 = vset.pattern.permute.xlu0 0
        %561 = vperm.xlu0 %560, %v557
        %v562 = vpop.permute.xlu0 %561
        %565 = vset.pattern.permute.xlu0 0
        %566 = vperm.xlu0 %565, %v558
        %v567 = vpop.permute.xlu0 %566
        %v571 = vunpack.c.l.b16 %v471
        %v572 = vunpack.c.l.b16 %v472
        %v573 = vpack.c.b16 %v572, %v571
        %v658 = vunpack.c.l.b16 %v473
        %v659 = vunpack.c.h.b16 %v473
        %v660 = vunpack.c.l.b16 %v474
        %v661 = vunpack.c.h.b16 %v474
        %v662 = vunpack.c.l.b16 %v475
        %v663 = vunpack.c.h.b16 %v475
        %v664 = vunpack.c.l.b16 %v476
        %v665 = vunpack.c.h.b16 %v476
        %v666 = vunpack.c.l.b16 %v477
        %v667 = vunpack.c.h.b16 %v477
        %v668 = vunpack.c.l.b16 %v478
        %v669 = vunpack.c.h.b16 %v478
        %v670 = vunpack.c.l.b16 %v479
        %v671 = vunpack.c.h.b16 %v479
        %v672 = vunpack.c.l.b16 %v480
        %v673 = vunpack.c.h.b16 %v480
        %v674 = vunpack.c.l.b16 %v481
        %v675 = vunpack.c.h.b16 %v481
        %v676 = vunpack.c.l.b16 %v482
        %v677 = vunpack.c.h.b16 %v482
        %v678 = vunpack.c.l.b16 %v483
        %v679 = vunpack.c.h.b16 %v483
        %v680 = vunpack.c.l.b16 %v484
        %v681 = vunpack.c.h.b16 %v484
        %v682 = vunpack.c.l.b16 %v485
        %v683 = vunpack.c.h.b16 %v485
        %v684 = vunpack.c.l.b16 %v486
        %v685 = vunpack.c.h.b16 %v486
        %v686 = vunpack.c.l.b16 %v487
        %v687 = vunpack.c.h.b16 %v487
        %v688 = vunpack.c.l.b16 %v488
        %v689 = vunpack.c.h.b16 %v488
        %v690 = vunpack.c.l.b16 %v489
        %v691 = vunpack.c.h.b16 %v489
        %v692 = vunpack.c.l.b16 %v490
        %v693 = vunpack.c.h.b16 %v490
        %v694 = vunpack.c.l.b16 %v491
        %v695 = vunpack.c.h.b16 %v491
        %v696 = vunpack.c.l.b16 %v492
        %v697 = vunpack.c.h.b16 %v492
        %v698 = vunpack.c.l.b16 %v493
        %v699 = vunpack.c.l.b16 %v494
        %v700 = vunpack.c.h.b16 %v494
        %v701 = vunpack.c.l.b16 %v495
        %v702 = vunpack.c.h.b16 %v495
        %v703 = vunpack.c.l.b16 %v496
        %v704 = vunpack.c.h.b16 %v496
        %v705 = vunpack.c.l.b16 %v497
        %v706 = vunpack.c.h.b16 %v497
        %v707 = vunpack.c.l.b16 %v498
        %v708 = vunpack.c.h.b16 %v498
        %v709 = vunpack.c.l.b16 %v499
        %v710 = vunpack.c.h.b16 %v499
        %v711 = vunpack.c.l.b16 %v500
        %v712 = vunpack.c.h.b16 %v500
        %v713 = vunpack.c.l.b16 %v501
        %v714 = vunpack.c.h.b16 %v501
        %v715 = vunpack.c.l.b16 %v502
        %v716 = vunpack.c.h.b16 %v502
        %v717 = vunpack.c.l.b16 %v503
        %v718 = vunpack.c.h.b16 %v503
        %v719 = vunpack.c.l.b16 %v504
        %v720 = vunpack.c.h.b16 %v504
        %v721 = vunpack.c.l.b16 %v505
        %v722 = vunpack.c.h.b16 %v505
        %v723 = vunpack.c.l.b16 %v506
        %v724 = vunpack.c.h.b16 %v506
        %v725 = vunpack.c.l.b16 %v507
        %v726 = vunpack.c.h.b16 %v507
        %v727 = vunpack.c.l.b16 %v508
        %v728 = vunpack.c.h.b16 %v508
        %v729 = vunpack.c.l.b16 %v509
        %v730 = vunpack.c.h.b16 %v509
        %v731 = vunpack.c.l.b16 %v510
        %v732 = vunpack.c.h.b16 %v510
        %v733 = vunpack.c.l.b16 %v511
        %v734 = vunpack.c.h.b16 %v511
        %v735 = vunpack.c.l.b16 %v512
        %v736 = vunpack.c.h.b16 %v512
        %v737 = vunpack.c.l.b16 %v513
        %v738 = vunpack.c.h.b16 %v513
        %v739 = vunpack.c.l.b16 %v514
        %v740 = vunpack.c.l.b16 %v515
        %v741 = vunpack.c.h.b16 %v515
        %v742 = vunpack.c.l.b16 %v516
        %v743 = vunpack.c.h.b16 %v516
        %v744 = vunpack.c.l.b16 %v517
        %v745 = vunpack.c.h.b16 %v517
        %v746 = vunpack.c.l.b16 %v518
        %v747 = vunpack.c.h.b16 %v518
        %v748 = vunpack.c.l.b16 %v519
        %v749 = vunpack.c.h.b16 %v519
        %v750 = vunpack.c.l.b16 %v520
        %v751 = vunpack.c.h.b16 %v520
        %v752 = vunpack.c.l.b16 %v521
        %v753 = vunpack.c.h.b16 %v521
        %v754 = vunpack.c.l.b16 %v522
        %v755 = vunpack.c.h.b16 %v522
        %v756 = vunpack.c.l.b16 %v523
        %v757 = vunpack.c.h.b16 %v523
        %v758 = vunpack.c.l.b16 %v524
        %v759 = vunpack.c.h.b16 %v524
        %v760 = vunpack.c.l.b16 %v525
        %v761 = vunpack.c.h.b16 %v525
        %v762 = vunpack.c.l.b16 %v526
        %v763 = vunpack.c.h.b16 %v526
        %v764 = vunpack.c.l.b16 %v527
        %v765 = vunpack.c.h.b16 %v527
        %v766 = vunpack.c.l.b16 %v528
        %v767 = vunpack.c.h.b16 %v528
        %v768 = vunpack.c.l.b16 %v529
        %v769 = vunpack.c.h.b16 %v529
        %v770 = vunpack.c.l.b16 %v530
        %v771 = vunpack.c.h.b16 %v530
        %v772 = vunpack.c.l.b16 %v531
        %v773 = vunpack.c.h.b16 %v531
        %v774 = vunpack.c.l.b16 %v532
        %v775 = vunpack.c.h.b16 %v532
        %v776 = vunpack.c.l.b16 %v533
        %v777 = vunpack.c.h.b16 %v533
        %v778 = vunpack.c.l.b16 %v534
        %v779 = vunpack.c.h.b16 %v534
        %v780 = vunpack.c.l.b16 %v535
        %v781 = vunpack.c.l.b16 %v536
        %v782 = vunpack.c.h.b16 %v536
        %v783 = vunpack.c.l.b16 %v537
        %v784 = vunpack.c.h.b16 %v537
        %v785 = vunpack.c.l.b16 %v538
        %v786 = vunpack.c.h.b16 %v538
        %v787 = vunpack.c.l.b16 %v539
        %v788 = vunpack.c.h.b16 %v539
        %v789 = vunpack.c.l.b16 %v540
        %v790 = vunpack.c.h.b16 %v540
        %v791 = vunpack.c.l.b16 %v541
        %v792 = vunpack.c.h.b16 %v541
        %v793 = vunpack.c.l.b16 %v542
        %v794 = vunpack.c.h.b16 %v542
        %v795 = vunpack.c.l.b16 %v543
        %v796 = vunpack.c.h.b16 %v543
        %v797 = vunpack.c.l.b16 %v544
        %v798 = vunpack.c.h.b16 %v544
        %v799 = vunpack.c.l.b16 %v545
        %v800 = vunpack.c.h.b16 %v545
        %v801 = vunpack.c.l.b16 %v546
        %v802 = vunpack.c.h.b16 %v546
        %v803 = vunpack.c.l.b16 %v547
        %v804 = vunpack.c.h.b16 %v547
        %v805 = vunpack.c.l.b16 %v548
        %v806 = vunpack.c.h.b16 %v548
        %v807 = vunpack.c.l.b16 %v549
        %v808 = vunpack.c.h.b16 %v549
        %v809 = vunpack.c.l.b16 %v550
        %v810 = vunpack.c.h.b16 %v550
        %v811 = vunpack.c.l.b16 %v551
        %v812 = vunpack.c.h.b16 %v551
        %v813 = vunpack.c.l.b16 %v552
        %v814 = vunpack.c.h.b16 %v552
        %v815 = vunpack.c.l.b16 %v553
        %v816 = vunpack.c.h.b16 %v553
        %v817 = vunpack.c.l.b16 %v554
        %v818 = vunpack.c.h.b16 %v554
        %v819 = vunpack.c.l.b16 %v555
        %v820 = vunpack.c.h.b16 %v555
        %v821 = vunpack.c.l.b16 %v556
        %v822 = vpack.c.b16 %v699, %v658
        %v823 = vpack.c.b16 %v700, %v659
        %v824 = vpack.c.b16 %v701, %v660
        %v825 = vpack.c.b16 %v702, %v661
        %v826 = vpack.c.b16 %v703, %v662
        %v827 = vpack.c.b16 %v704, %v663
        %v828 = vpack.c.b16 %v705, %v664
        %v829 = vpack.c.b16 %v706, %v665
        %v830 = vpack.c.b16 %v707, %v666
        %v831 = vpack.c.b16 %v708, %v667
        %v832 = vpack.c.b16 %v709, %v668
        %v833 = vpack.c.b16 %v710, %v669
        %v834 = vpack.c.b16 %v711, %v670
        %v835 = vpack.c.b16 %v712, %v671
        %v836 = vpack.c.b16 %v713, %v672
        %v837 = vpack.c.b16 %v714, %v673
        %v838 = vpack.c.b16 %v715, %v674
        %v839 = vpack.c.b16 %v716, %v675
        %v840 = vpack.c.b16 %v717, %v676
        %v841 = vpack.c.b16 %v718, %v677
        %v842 = vpack.c.b16 %v719, %v678
        %v843 = vpack.c.b16 %v720, %v679
        %v844 = vpack.c.b16 %v721, %v680
        %v845 = vpack.c.b16 %v722, %v681
        %v846 = vpack.c.b16 %v723, %v682
        %v847 = vpack.c.b16 %v724, %v683
        %v848 = vpack.c.b16 %v725, %v684
        %v849 = vpack.c.b16 %v726, %v685
        %v850 = vpack.c.b16 %v727, %v686
        %v851 = vpack.c.b16 %v728, %v687
        %v852 = vpack.c.b16 %v729, %v688
        %v853 = vpack.c.b16 %v730, %v689
        %v854 = vpack.c.b16 %v731, %v690
        %v855 = vpack.c.b16 %v732, %v691
        %v856 = vpack.c.b16 %v733, %v692
        %v857 = vpack.c.b16 %v734, %v693
        %v858 = vpack.c.b16 %v735, %v694
        %v859 = vpack.c.b16 %v736, %v695
        %v860 = vpack.c.b16 %v737, %v696
        %v861 = vpack.c.b16 %v738, %v697
        %v862 = vpack.c.b16 %v739, %v698
        %v863 = vpack.c.b16 %v781, %v740
        %v864 = vpack.c.b16 %v782, %v741
        %v865 = vpack.c.b16 %v783, %v742
        %v866 = vpack.c.b16 %v784, %v743
        %v867 = vpack.c.b16 %v785, %v744
        %v868 = vpack.c.b16 %v786, %v745
        %v869 = vpack.c.b16 %v787, %v746
        %v870 = vpack.c.b16 %v788, %v747
        %v871 = vpack.c.b16 %v789, %v748
        %v872 = vpack.c.b16 %v790, %v749
        %v873 = vpack.c.b16 %v791, %v750
        %v874 = vpack.c.b16 %v792, %v751
        %v875 = vpack.c.b16 %v793, %v752
        %v876 = vpack.c.b16 %v794, %v753
        %v877 = vpack.c.b16 %v795, %v754
        %v878 = vpack.c.b16 %v796, %v755
        %v879 = vpack.c.b16 %v797, %v756
        %v880 = vpack.c.b16 %v798, %v757
        %v881 = vpack.c.b16 %v799, %v758
        %v882 = vpack.c.b16 %v800, %v759
        %v883 = vpack.c.b16 %v801, %v760
        %v884 = vpack.c.b16 %v802, %v761
        %v885 = vpack.c.b16 %v803, %v762
        %v886 = vpack.c.b16 %v804, %v763
        %v887 = vpack.c.b16 %v805, %v764
        %v888 = vpack.c.b16 %v806, %v765
        %v889 = vpack.c.b16 %v807, %v766
        %v890 = vpack.c.b16 %v808, %v767
        %v891 = vpack.c.b16 %v809, %v768
        %v892 = vpack.c.b16 %v810, %v769
        %v893 = vpack.c.b16 %v811, %v770
        %v894 = vpack.c.b16 %v812, %v771
        %v895 = vpack.c.b16 %v813, %v772
        %v896 = vpack.c.b16 %v814, %v773
        %v897 = vpack.c.b16 %v815, %v774
        %v898 = vpack.c.b16 %v816, %v775
        %v899 = vpack.c.b16 %v817, %v776
        %v900 = vpack.c.b16 %v818, %v777
        %v901 = vpack.c.b16 %v819, %v778
        %v902 = vpack.c.b16 %v820, %v779
        %v903 = vpack.c.b16 %v821, %v780
        %vm945 = vcmask 220160
        %v947 = vsel %vm945, %v573, 0
        %vm949 = vcmask 1044480
        %vm950 = vcmask 1045504
        %v951 = vsel %vm949, 4294967295, 65535
        %v952 = vsel %vm950, %v951, 0
        %v954 = vand.u32 %v863, %v952
        %v957 = vand.u32 %v864, %v952
        %v960 = vand.u32 %v865, %v952
        %v963 = vand.u32 %v866, %v952
        %v966 = vand.u32 %v867, %v952
        %v969 = vand.u32 %v868, %v952
        %v972 = vand.u32 %v869, %v952
        %v975 = vand.u32 %v870, %v952
        %v978 = vand.u32 %v871, %v952
        %v981 = vand.u32 %v872, %v952
        %v984 = vand.u32 %v873, %v952
        %v987 = vand.u32 %v874, %v952
        %v990 = vand.u32 %v875, %v952
        %v993 = vand.u32 %v876, %v952
        %v996 = vand.u32 %v877, %v952
        %v999 = vand.u32 %v878, %v952
        %v1002 = vand.u32 %v879, %v952
        %v1005 = vand.u32 %v880, %v952
        %v1008 = vand.u32 %v881, %v952
        %v1011 = vand.u32 %v882, %v952
        %v1014 = vand.u32 %v883, %v952
        %v1017 = vand.u32 %v884, %v952
        %v1020 = vand.u32 %v885, %v952
        %v1023 = vand.u32 %v886, %v952
        %v1026 = vand.u32 %v887, %v952
        %v1029 = vand.u32 %v888, %v952
        %v1032 = vand.u32 %v889, %v952
        %v1035 = vand.u32 %v890, %v952
        %v1038 = vand.u32 %v891, %v952
        %v1041 = vand.u32 %v892, %v952
        %v1044 = vand.u32 %v893, %v952
        %v1047 = vand.u32 %v894, %v952
        %v1050 = vand.u32 %v895, %v952
        %v1053 = vand.u32 %v896, %v952
        %v1056 = vand.u32 %v897, %v952
        %v1059 = vand.u32 %v898, %v952
        %v1062 = vand.u32 %v899, %v952
        %v1065 = vand.u32 %v900, %v952
        %v1068 = vand.u32 %v901, %v952
        %v1071 = vand.u32 %v902, %v952
        %v1074 = vand.u32 %v903, %v952
        %1076 = vmatpush.bf16.msra.mxu0 0
        %1077 = vmatpush.bf16.msra.mxu0 0
        %1078 = vmatpush.bf16.msra.mxu0 0
        %1079 = vmatpush.bf16.msra.mxu0 0
        %1080 = vmatpush.bf16.msra.mxu0 0
        %1081 = vmatpush.bf16.msra.mxu0 0
        %1082 = vmatpush.bf16.msra.mxu0 %v954
        %1083 = vmatpush.bf16.msra.mxu0 %v822
        %1084 = vmatmul.bf16.gmra.mxu0 %v947
        %v1085 = vpop.f32.mrf.mxu0
        %v1086 = vadd.f32 %v562, %v1085
        %v1087 = vpop.f32.mrf.mxu0
        %v1088 = vadd.f32 %v567, %v1087
        %1089 = vdwg.mxu0
        %1090 = vmatpush.bf16.msra.mxu0 0
        %1091 = vmatpush.bf16.msra.mxu0 0
        %1092 = vmatpush.bf16.msra.mxu0 0
        %1093 = vmatpush.bf16.msra.mxu0 0
        %1094 = vmatpush.bf16.msra.mxu0 0
        %1095 = vmatpush.bf16.msra.mxu0 0
        %1096 = vmatpush.bf16.msra.mxu0 %v957
        %1097 = vmatpush.bf16.msra.mxu0 %v823
        %1098 = vmatmul.bf16.gmra.mxu0 %v947
        %v1099 = vpop.f32.mrf.mxu0
        %v1100 = vadd.f32 %v562, %v1099
        %v1101 = vpop.f32.mrf.mxu0
        %v1102 = vadd.f32 %v567, %v1101
        %1103 = vdwg.mxu0
        %1104 = vmatpush.bf16.msra.mxu0 0
        %1105 = vmatpush.bf16.msra.mxu0 0
        %1106 = vmatpush.bf16.msra.mxu0 0
        %1107 = vmatpush.bf16.msra.mxu0 0
        %1108 = vmatpush.bf16.msra.mxu0 0
        %1109 = vmatpush.bf16.msra.mxu0 0
        %1110 = vmatpush.bf16.msra.mxu0 %v960
        %1111 = vmatpush.bf16.msra.mxu0 %v824
        %1112 = vmatmul.bf16.gmra.mxu0 %v947
        %v1113 = vpop.f32.mrf.mxu0
        %v1114 = vadd.f32 %v562, %v1113
        %v1115 = vpop.f32.mrf.mxu0
        %v1116 = vadd.f32 %v567, %v1115
        %1117 = vdwg.mxu0
        %1118 = vmatpush.bf16.msra.mxu0 0
        %1119 = vmatpush.bf16.msra.mxu0 0
        %1120 = vmatpush.bf16.msra.mxu0 0
        %1121 = vmatpush.bf16.msra.mxu0 0
        %1122 = vmatpush.bf16.msra.mxu0 0
        %1123 = vmatpush.bf16.msra.mxu0 0
        %1124 = vmatpush.bf16.msra.mxu0 %v963
        %1125 = vmatpush.bf16.msra.mxu0 %v825
        %1126 = vmatmul.bf16.gmra.mxu0 %v947
        %v1127 = vpop.f32.mrf.mxu0
        %v1128 = vadd.f32 %v562, %v1127
        %v1129 = vpop.f32.mrf.mxu0
        %v1130 = vadd.f32 %v567, %v1129
        %1131 = vdwg.mxu0
        %1132 = vmatpush.bf16.msra.mxu0 0
        %1133 = vmatpush.bf16.msra.mxu0 0
        %1134 = vmatpush.bf16.msra.mxu0 0
        %1135 = vmatpush.bf16.msra.mxu0 0
        %1136 = vmatpush.bf16.msra.mxu0 0
        %1137 = vmatpush.bf16.msra.mxu0 0
        %1138 = vmatpush.bf16.msra.mxu0 %v966
        %1139 = vmatpush.bf16.msra.mxu0 %v826
        %1140 = vmatmul.bf16.gmra.mxu0 %v947
        %v1141 = vpop.f32.mrf.mxu0
        %v1142 = vadd.f32 %v562, %v1141
        %v1143 = vpop.f32.mrf.mxu0
        %v1144 = vadd.f32 %v567, %v1143
        %1145 = vdwg.mxu0
        %1146 = vmatpush.bf16.msra.mxu0 0
        %1147 = vmatpush.bf16.msra.mxu0 0
        %1148 = vmatpush.bf16.msra.mxu0 0
        %1149 = vmatpush.bf16.msra.mxu0 0
        %1150 = vmatpush.bf16.msra.mxu0 0
        %1151 = vmatpush.bf16.msra.mxu0 0
        %1152 = vmatpush.bf16.msra.mxu0 %v969
        %1153 = vmatpush.bf16.msra.mxu0 %v827
        %1154 = vmatmul.bf16.gmra.mxu0 %v947
        %v1155 = vpop.f32.mrf.mxu0
        %v1156 = vadd.f32 %v562, %v1155
        %v1157 = vpop.f32.mrf.mxu0
        %v1158 = vadd.f32 %v567, %v1157
        %1159 = vdwg.mxu0
        %1160 = vmatpush.bf16.msra.mxu0 0
        %1161 = vmatpush.bf16.msra.mxu0 0
        %1162 = vmatpush.bf16.msra.mxu0 0
        %1163 = vmatpush.bf16.msra.mxu0 0
        %1164 = vmatpush.bf16.msra.mxu0 0
        %1165 = vmatpush.bf16.msra.mxu0 0
        %1166 = vmatpush.bf16.msra.mxu0 %v972
        %1167 = vmatpush.bf16.msra.mxu0 %v828
        %1168 = vmatmul.bf16.gmra.mxu0 %v947
        %v1169 = vpop.f32.mrf.mxu0
        %v1170 = vadd.f32 %v562, %v1169
        %v1171 = vpop.f32.mrf.mxu0
        %v1172 = vadd.f32 %v567, %v1171
        %1173 = vdwg.mxu0
        %1174 = vmatpush.bf16.msra.mxu0 0
        %1175 = vmatpush.bf16.msra.mxu0 0
        %1176 = vmatpush.bf16.msra.mxu0 0
        %1177 = vmatpush.bf16.msra.mxu0 0
        %1178 = vmatpush.bf16.msra.mxu0 0
        %1179 = vmatpush.bf16.msra.mxu0 0
        %1180 = vmatpush.bf16.msra.mxu0 %v975
        %1181 = vmatpush.bf16.msra.mxu0 %v829
        %1182 = vmatmul.bf16.gmra.mxu0 %v947
        %v1183 = vpop.f32.mrf.mxu0
        %v1184 = vadd.f32 %v562, %v1183
        %v1185 = vpop.f32.mrf.mxu0
        %v1186 = vadd.f32 %v567, %v1185
        %1187 = vdwg.mxu0
        %1188 = vmatpush.bf16.msra.mxu0 0
        %1189 = vmatpush.bf16.msra.mxu0 0
        %1190 = vmatpush.bf16.msra.mxu0 0
        %1191 = vmatpush.bf16.msra.mxu0 0
        %1192 = vmatpush.bf16.msra.mxu0 0
        %1193 = vmatpush.bf16.msra.mxu0 0
        %1194 = vmatpush.bf16.msra.mxu0 %v978
        %1195 = vmatpush.bf16.msra.mxu0 %v830
        %1196 = vmatmul.bf16.gmra.mxu0 %v947
        %v1197 = vpop.f32.mrf.mxu0
        %v1198 = vadd.f32 %v562, %v1197
        %v1199 = vpop.f32.mrf.mxu0
        %v1200 = vadd.f32 %v567, %v1199
        %1201 = vdwg.mxu0
        %1202 = vmatpush.bf16.msra.mxu0 0
        %1203 = vmatpush.bf16.msra.mxu0 0
        %1204 = vmatpush.bf16.msra.mxu0 0
        %1205 = vmatpush.bf16.msra.mxu0 0
        %1206 = vmatpush.bf16.msra.mxu0 0
        %1207 = vmatpush.bf16.msra.mxu0 0
        %1208 = vmatpush.bf16.msra.mxu0 %v981
        %1209 = vmatpush.bf16.msra.mxu0 %v831
        %1210 = vmatmul.bf16.gmra.mxu0 %v947
        %v1211 = vpop.f32.mrf.mxu0
        %v1212 = vadd.f32 %v562, %v1211
        %v1213 = vpop.f32.mrf.mxu0
        %v1214 = vadd.f32 %v567, %v1213
        %1215 = vdwg.mxu0
        %1216 = vmatpush.bf16.msra.mxu0 0
        %1217 = vmatpush.bf16.msra.mxu0 0
        %1218 = vmatpush.bf16.msra.mxu0 0
        %1219 = vmatpush.bf16.msra.mxu0 0
        %1220 = vmatpush.bf16.msra.mxu0 0
        %1221 = vmatpush.bf16.msra.mxu0 0
        %1222 = vmatpush.bf16.msra.mxu0 %v984
        %1223 = vmatpush.bf16.msra.mxu0 %v832
        %1224 = vmatmul.bf16.gmra.mxu0 %v947
        %v1225 = vpop.f32.mrf.mxu0
        %v1226 = vadd.f32 %v562, %v1225
        %v1227 = vpop.f32.mrf.mxu0
        %v1228 = vadd.f32 %v567, %v1227
        %1229 = vdwg.mxu0
        %1230 = vmatpush.bf16.msra.mxu0 0
        %1231 = vmatpush.bf16.msra.mxu0 0
        %1232 = vmatpush.bf16.msra.mxu0 0
        %1233 = vmatpush.bf16.msra.mxu0 0
        %1234 = vmatpush.bf16.msra.mxu0 0
        %1235 = vmatpush.bf16.msra.mxu0 0
        %1236 = vmatpush.bf16.msra.mxu0 %v987
        %1237 = vmatpush.bf16.msra.mxu0 %v833
        %1238 = vmatmul.bf16.gmra.mxu0 %v947
        %v1239 = vpop.f32.mrf.mxu0
        %v1240 = vadd.f32 %v562, %v1239
        %v1241 = vpop.f32.mrf.mxu0
        %v1242 = vadd.f32 %v567, %v1241
        %1243 = vdwg.mxu0
        %1244 = vmatpush.bf16.msra.mxu0 0
        %1245 = vmatpush.bf16.msra.mxu0 0
        %1246 = vmatpush.bf16.msra.mxu0 0
        %1247 = vmatpush.bf16.msra.mxu0 0
        %1248 = vmatpush.bf16.msra.mxu0 0
        %1249 = vmatpush.bf16.msra.mxu0 0
        %1250 = vmatpush.bf16.msra.mxu0 %v990
        %1251 = vmatpush.bf16.msra.mxu0 %v834
        %1252 = vmatmul.bf16.gmra.mxu0 %v947
        %v1253 = vpop.f32.mrf.mxu0
        %v1254 = vadd.f32 %v562, %v1253
        %v1255 = vpop.f32.mrf.mxu0
        %v1256 = vadd.f32 %v567, %v1255
        %1257 = vdwg.mxu0
        %1258 = vmatpush.bf16.msra.mxu0 0
        %1259 = vmatpush.bf16.msra.mxu0 0
        %1260 = vmatpush.bf16.msra.mxu0 0
        %1261 = vmatpush.bf16.msra.mxu0 0
        %1262 = vmatpush.bf16.msra.mxu0 0
        %1263 = vmatpush.bf16.msra.mxu0 0
        %1264 = vmatpush.bf16.msra.mxu0 %v993
        %1265 = vmatpush.bf16.msra.mxu0 %v835
        %1266 = vmatmul.bf16.gmra.mxu0 %v947
        %v1267 = vpop.f32.mrf.mxu0
        %v1268 = vadd.f32 %v562, %v1267
        %v1269 = vpop.f32.mrf.mxu0
        %v1270 = vadd.f32 %v567, %v1269
        %1271 = vdwg.mxu0
        %1272 = vmatpush.bf16.msra.mxu0 0
        %1273 = vmatpush.bf16.msra.mxu0 0
        %1274 = vmatpush.bf16.msra.mxu0 0
        %1275 = vmatpush.bf16.msra.mxu0 0
        %1276 = vmatpush.bf16.msra.mxu0 0
        %1277 = vmatpush.bf16.msra.mxu0 0
        %1278 = vmatpush.bf16.msra.mxu0 %v996
        %1279 = vmatpush.bf16.msra.mxu0 %v836
        %1280 = vmatmul.bf16.gmra.mxu0 %v947
        %v1281 = vpop.f32.mrf.mxu0
        %v1282 = vadd.f32 %v562, %v1281
        %v1283 = vpop.f32.mrf.mxu0
        %v1284 = vadd.f32 %v567, %v1283
        %1285 = vdwg.mxu0
        %1286 = vmatpush.bf16.msra.mxu0 0
        %1287 = vmatpush.bf16.msra.mxu0 0
        %1288 = vmatpush.bf16.msra.mxu0 0
        %1289 = vmatpush.bf16.msra.mxu0 0
        %1290 = vmatpush.bf16.msra.mxu0 0
        %1291 = vmatpush.bf16.msra.mxu0 0
        %1292 = vmatpush.bf16.msra.mxu0 %v999
        %1293 = vmatpush.bf16.msra.mxu0 %v837
        %1294 = vmatmul.bf16.gmra.mxu0 %v947
        %v1295 = vpop.f32.mrf.mxu0
        %v1296 = vadd.f32 %v562, %v1295
        %v1297 = vpop.f32.mrf.mxu0
        %v1298 = vadd.f32 %v567, %v1297
        %1299 = vdwg.mxu0
        %1300 = vmatpush.bf16.msra.mxu0 0
        %1301 = vmatpush.bf16.msra.mxu0 0
        %1302 = vmatpush.bf16.msra.mxu0 0
        %1303 = vmatpush.bf16.msra.mxu0 0
        %1304 = vmatpush.bf16.msra.mxu0 0
        %1305 = vmatpush.bf16.msra.mxu0 0
        %1306 = vmatpush.bf16.msra.mxu0 %v1002
        %1307 = vmatpush.bf16.msra.mxu0 %v838
        %1308 = vmatmul.bf16.gmra.mxu0 %v947
        %v1309 = vpop.f32.mrf.mxu0
        %v1310 = vadd.f32 %v562, %v1309
        %v1311 = vpop.f32.mrf.mxu0
        %v1312 = vadd.f32 %v567, %v1311
        %1313 = vdwg.mxu0
        %1314 = vmatpush.bf16.msra.mxu0 0
        %1315 = vmatpush.bf16.msra.mxu0 0
        %1316 = vmatpush.bf16.msra.mxu0 0
        %1317 = vmatpush.bf16.msra.mxu0 0
        %1318 = vmatpush.bf16.msra.mxu0 0
        %1319 = vmatpush.bf16.msra.mxu0 0
        %1320 = vmatpush.bf16.msra.mxu0 %v1005
        %1321 = vmatpush.bf16.msra.mxu0 %v839
        %1322 = vmatmul.bf16.gmra.mxu0 %v947
        %v1323 = vpop.f32.mrf.mxu0
        %v1324 = vadd.f32 %v562, %v1323
        %v1325 = vpop.f32.mrf.mxu0
        %v1326 = vadd.f32 %v567, %v1325
        %1327 = vdwg.mxu0
        %1328 = vmatpush.bf16.msra.mxu0 0
        %1329 = vmatpush.bf16.msra.mxu0 0
        %1330 = vmatpush.bf16.msra.mxu0 0
        %1331 = vmatpush.bf16.msra.mxu0 0
        %1332 = vmatpush.bf16.msra.mxu0 0
        %1333 = vmatpush.bf16.msra.mxu0 0
        %1334 = vmatpush.bf16.msra.mxu0 %v1008
        %1335 = vmatpush.bf16.msra.mxu0 %v840
        %1336 = vmatmul.bf16.gmra.mxu0 %v947
        %v1337 = vpop.f32.mrf.mxu0
        %v1338 = vadd.f32 %v562, %v1337
        %v1339 = vpop.f32.mrf.mxu0
        %v1340 = vadd.f32 %v567, %v1339
        %1341 = vdwg.mxu0
        %1342 = vmatpush.bf16.msra.mxu0 0
        %1343 = vmatpush.bf16.msra.mxu0 0
        %1344 = vmatpush.bf16.msra.mxu0 0
        %1345 = vmatpush.bf16.msra.mxu0 0
        %1346 = vmatpush.bf16.msra.mxu0 0
        %1347 = vmatpush.bf16.msra.mxu0 0
        %1348 = vmatpush.bf16.msra.mxu0 %v1011
        %1349 = vmatpush.bf16.msra.mxu0 %v841
        %1350 = vmatmul.bf16.gmra.mxu0 %v947
        %v1351 = vpop.f32.mrf.mxu0
        %v1352 = vadd.f32 %v562, %v1351
        %v1353 = vpop.f32.mrf.mxu0
        %v1354 = vadd.f32 %v567, %v1353
        %1355 = vdwg.mxu0
        %1356 = vmatpush.bf16.msra.mxu0 0
        %1357 = vmatpush.bf16.msra.mxu0 0
        %1358 = vmatpush.bf16.msra.mxu0 0
        %1359 = vmatpush.bf16.msra.mxu0 0
        %1360 = vmatpush.bf16.msra.mxu0 0
        %1361 = vmatpush.bf16.msra.mxu0 0
        %1362 = vmatpush.bf16.msra.mxu0 %v1014
        %1363 = vmatpush.bf16.msra.mxu0 %v842
        %1364 = vmatmul.bf16.gmra.mxu0 %v947
        %v1365 = vpop.f32.mrf.mxu0
        %v1366 = vadd.f32 %v562, %v1365
        %v1367 = vpop.f32.mrf.mxu0
        %v1368 = vadd.f32 %v567, %v1367
        %1369 = vdwg.mxu0
        %1370 = vmatpush.bf16.msra.mxu0 0
        %1371 = vmatpush.bf16.msra.mxu0 0
        %1372 = vmatpush.bf16.msra.mxu0 0
        %1373 = vmatpush.bf16.msra.mxu0 0
        %1374 = vmatpush.bf16.msra.mxu0 0
        %1375 = vmatpush.bf16.msra.mxu0 0
        %1376 = vmatpush.bf16.msra.mxu0 %v1017
        %1377 = vmatpush.bf16.msra.mxu0 %v843
        %1378 = vmatmul.bf16.gmra.mxu0 %v947
        %v1379 = vpop.f32.mrf.mxu0
        %v1380 = vadd.f32 %v562, %v1379
        %v1381 = vpop.f32.mrf.mxu0
        %v1382 = vadd.f32 %v567, %v1381
        %1383 = vdwg.mxu0
        %1384 = vmatpush.bf16.msra.mxu0 0
        %1385 = vmatpush.bf16.msra.mxu0 0
        %1386 = vmatpush.bf16.msra.mxu0 0
        %1387 = vmatpush.bf16.msra.mxu0 0
        %1388 = vmatpush.bf16.msra.mxu0 0
        %1389 = vmatpush.bf16.msra.mxu0 0
        %1390 = vmatpush.bf16.msra.mxu0 %v1020
        %1391 = vmatpush.bf16.msra.mxu0 %v844
        %1392 = vmatmul.bf16.gmra.mxu0 %v947
        %v1393 = vpop.f32.mrf.mxu0
        %v1394 = vadd.f32 %v562, %v1393
        %v1395 = vpop.f32.mrf.mxu0
        %v1396 = vadd.f32 %v567, %v1395
        %1397 = vdwg.mxu0
        %1398 = vmatpush.bf16.msra.mxu0 0
        %1399 = vmatpush.bf16.msra.mxu0 0
        %1400 = vmatpush.bf16.msra.mxu0 0
        %1401 = vmatpush.bf16.msra.mxu0 0
        %1402 = vmatpush.bf16.msra.mxu0 0
        %1403 = vmatpush.bf16.msra.mxu0 0
        %1404 = vmatpush.bf16.msra.mxu0 %v1023
        %1405 = vmatpush.bf16.msra.mxu0 %v845
        %1406 = vmatmul.bf16.gmra.mxu0 %v947
        %v1407 = vpop.f32.mrf.mxu0
        %v1408 = vadd.f32 %v562, %v1407
        %v1409 = vpop.f32.mrf.mxu0
        %v1410 = vadd.f32 %v567, %v1409
        %1411 = vdwg.mxu0
        %1412 = vmatpush.bf16.msra.mxu0 0
        %1413 = vmatpush.bf16.msra.mxu0 0
        %1414 = vmatpush.bf16.msra.mxu0 0
        %1415 = vmatpush.bf16.msra.mxu0 0
        %1416 = vmatpush.bf16.msra.mxu0 0
        %1417 = vmatpush.bf16.msra.mxu0 0
        %1418 = vmatpush.bf16.msra.mxu0 %v1026
        %1419 = vmatpush.bf16.msra.mxu0 %v846
        %1420 = vmatmul.bf16.gmra.mxu0 %v947
        %v1421 = vpop.f32.mrf.mxu0
        %v1422 = vadd.f32 %v562, %v1421
        %v1423 = vpop.f32.mrf.mxu0
        %v1424 = vadd.f32 %v567, %v1423
        %1425 = vdwg.mxu0
        %1426 = vmatpush.bf16.msra.mxu0 0
        %1427 = vmatpush.bf16.msra.mxu0 0
        %1428 = vmatpush.bf16.msra.mxu0 0
        %1429 = vmatpush.bf16.msra.mxu0 0
        %1430 = vmatpush.bf16.msra.mxu0 0
        %1431 = vmatpush.bf16.msra.mxu0 0
        %1432 = vmatpush.bf16.msra.mxu0 %v1029
        %1433 = vmatpush.bf16.msra.mxu0 %v847
        %1434 = vmatmul.bf16.gmra.mxu0 %v947
        %v1435 = vpop.f32.mrf.mxu0
        %v1436 = vadd.f32 %v562, %v1435
        %v1437 = vpop.f32.mrf.mxu0
        %v1438 = vadd.f32 %v567, %v1437
        %1439 = vdwg.mxu0
        %1440 = vmatpush.bf16.msra.mxu0 0
        %1441 = vmatpush.bf16.msra.mxu0 0
        %1442 = vmatpush.bf16.msra.mxu0 0
        %1443 = vmatpush.bf16.msra.mxu0 0
        %1444 = vmatpush.bf16.msra.mxu0 0
        %1445 = vmatpush.bf16.msra.mxu0 0
        %1446 = vmatpush.bf16.msra.mxu0 %v1032
        %1447 = vmatpush.bf16.msra.mxu0 %v848
        %1448 = vmatmul.bf16.gmra.mxu0 %v947
        %v1449 = vpop.f32.mrf.mxu0
        %v1450 = vadd.f32 %v562, %v1449
        %v1451 = vpop.f32.mrf.mxu0
        %v1452 = vadd.f32 %v567, %v1451
        %1453 = vdwg.mxu0
        %1454 = vmatpush.bf16.msra.mxu0 0
        %1455 = vmatpush.bf16.msra.mxu0 0
        %1456 = vmatpush.bf16.msra.mxu0 0
        %1457 = vmatpush.bf16.msra.mxu0 0
        %1458 = vmatpush.bf16.msra.mxu0 0
        %1459 = vmatpush.bf16.msra.mxu0 0
        %1460 = vmatpush.bf16.msra.mxu0 %v1035
        %1461 = vmatpush.bf16.msra.mxu0 %v849
        %1462 = vmatmul.bf16.gmra.mxu0 %v947
        %v1463 = vpop.f32.mrf.mxu0
        %v1464 = vadd.f32 %v562, %v1463
        %v1465 = vpop.f32.mrf.mxu0
        %v1466 = vadd.f32 %v567, %v1465
        %1467 = vdwg.mxu0
        %1468 = vmatpush.bf16.msra.mxu0 0
        %1469 = vmatpush.bf16.msra.mxu0 0
        %1470 = vmatpush.bf16.msra.mxu0 0
        %1471 = vmatpush.bf16.msra.mxu0 0
        %1472 = vmatpush.bf16.msra.mxu0 0
        %1473 = vmatpush.bf16.msra.mxu0 0
        %1474 = vmatpush.bf16.msra.mxu0 %v1038
        %1475 = vmatpush.bf16.msra.mxu0 %v850
        %1476 = vmatmul.bf16.gmra.mxu0 %v947
        %v1477 = vpop.f32.mrf.mxu0
        %v1478 = vadd.f32 %v562, %v1477
        %v1479 = vpop.f32.mrf.mxu0
        %v1480 = vadd.f32 %v567, %v1479
        %1481 = vdwg.mxu0
        %1482 = vmatpush.bf16.msra.mxu0 0
        %1483 = vmatpush.bf16.msra.mxu0 0
        %1484 = vmatpush.bf16.msra.mxu0 0
        %1485 = vmatpush.bf16.msra.mxu0 0
        %1486 = vmatpush.bf16.msra.mxu0 0
        %1487 = vmatpush.bf16.msra.mxu0 0
        %1488 = vmatpush.bf16.msra.mxu0 %v1041
        %1489 = vmatpush.bf16.msra.mxu0 %v851
        %1490 = vmatmul.bf16.gmra.mxu0 %v947
        %v1491 = vpop.f32.mrf.mxu0
        %v1492 = vadd.f32 %v562, %v1491
        %v1493 = vpop.f32.mrf.mxu0
        %v1494 = vadd.f32 %v567, %v1493
        %1495 = vdwg.mxu0
        %1496 = vmatpush.bf16.msra.mxu0 0
        %1497 = vmatpush.bf16.msra.mxu0 0
        %1498 = vmatpush.bf16.msra.mxu0 0
        %1499 = vmatpush.bf16.msra.mxu0 0
        %1500 = vmatpush.bf16.msra.mxu0 0
        %1501 = vmatpush.bf16.msra.mxu0 0
        %1502 = vmatpush.bf16.msra.mxu0 %v1044
        %1503 = vmatpush.bf16.msra.mxu0 %v852
        %1504 = vmatmul.bf16.gmra.mxu0 %v947
        %v1505 = vpop.f32.mrf.mxu0
        %v1506 = vadd.f32 %v562, %v1505
        %v1507 = vpop.f32.mrf.mxu0
        %v1508 = vadd.f32 %v567, %v1507
        %1509 = vdwg.mxu0
        %1510 = vmatpush.bf16.msra.mxu0 0
        %1511 = vmatpush.bf16.msra.mxu0 0
        %1512 = vmatpush.bf16.msra.mxu0 0
        %1513 = vmatpush.bf16.msra.mxu0 0
        %1514 = vmatpush.bf16.msra.mxu0 0
        %1515 = vmatpush.bf16.msra.mxu0 0
        %1516 = vmatpush.bf16.msra.mxu0 %v1047
        %1517 = vmatpush.bf16.msra.mxu0 %v853
        %1518 = vmatmul.bf16.gmra.mxu0 %v947
        %v1519 = vpop.f32.mrf.mxu0
        %v1520 = vadd.f32 %v562, %v1519
        %v1521 = vpop.f32.mrf.mxu0
        %v1522 = vadd.f32 %v567, %v1521
        %1523 = vdwg.mxu0
        %1524 = vmatpush.bf16.msra.mxu0 0
        %1525 = vmatpush.bf16.msra.mxu0 0
        %1526 = vmatpush.bf16.msra.mxu0 0
        %1527 = vmatpush.bf16.msra.mxu0 0
        %1528 = vmatpush.bf16.msra.mxu0 0
        %1529 = vmatpush.bf16.msra.mxu0 0
        %1530 = vmatpush.bf16.msra.mxu0 %v1050
        %1531 = vmatpush.bf16.msra.mxu0 %v854
        %1532 = vmatmul.bf16.gmra.mxu0 %v947
        %v1533 = vpop.f32.mrf.mxu0
        %v1534 = vadd.f32 %v562, %v1533
        %v1535 = vpop.f32.mrf.mxu0
        %v1536 = vadd.f32 %v567, %v1535
        %1537 = vdwg.mxu0
        %1538 = vmatpush.bf16.msra.mxu0 0
        %1539 = vmatpush.bf16.msra.mxu0 0
        %1540 = vmatpush.bf16.msra.mxu0 0
        %1541 = vmatpush.bf16.msra.mxu0 0
        %1542 = vmatpush.bf16.msra.mxu0 0
        %1543 = vmatpush.bf16.msra.mxu0 0
        %1544 = vmatpush.bf16.msra.mxu0 %v1053
        %1545 = vmatpush.bf16.msra.mxu0 %v855
        %1546 = vmatmul.bf16.gmra.mxu0 %v947
        %v1547 = vpop.f32.mrf.mxu0
        %v1548 = vadd.f32 %v562, %v1547
        %v1549 = vpop.f32.mrf.mxu0
        %v1550 = vadd.f32 %v567, %v1549
        %1551 = vdwg.mxu0
        %1552 = vmatpush.bf16.msra.mxu0 0
        %1553 = vmatpush.bf16.msra.mxu0 0
        %1554 = vmatpush.bf16.msra.mxu0 0
        %1555 = vmatpush.bf16.msra.mxu0 0
        %1556 = vmatpush.bf16.msra.mxu0 0
        %1557 = vmatpush.bf16.msra.mxu0 0
        %1558 = vmatpush.bf16.msra.mxu0 %v1056
        %1559 = vmatpush.bf16.msra.mxu0 %v856
        %1560 = vmatmul.bf16.gmra.mxu0 %v947
        %v1561 = vpop.f32.mrf.mxu0
        %v1562 = vadd.f32 %v562, %v1561
        %v1563 = vpop.f32.mrf.mxu0
        %v1564 = vadd.f32 %v567, %v1563
        %1565 = vdwg.mxu0
        %1566 = vmatpush.bf16.msra.mxu0 0
        %1567 = vmatpush.bf16.msra.mxu0 0
        %1568 = vmatpush.bf16.msra.mxu0 0
        %1569 = vmatpush.bf16.msra.mxu0 0
        %1570 = vmatpush.bf16.msra.mxu0 0
        %1571 = vmatpush.bf16.msra.mxu0 0
        %1572 = vmatpush.bf16.msra.mxu0 %v1059
        %1573 = vmatpush.bf16.msra.mxu0 %v857
        %1574 = vmatmul.bf16.gmra.mxu0 %v947
        %v1575 = vpop.f32.mrf.mxu0
        %v1576 = vadd.f32 %v562, %v1575
        %v1577 = vpop.f32.mrf.mxu0
        %v1578 = vadd.f32 %v567, %v1577
        %1579 = vdwg.mxu0
        %1580 = vmatpush.bf16.msra.mxu0 0
        %1581 = vmatpush.bf16.msra.mxu0 0
        %1582 = vmatpush.bf16.msra.mxu0 0
        %1583 = vmatpush.bf16.msra.mxu0 0
        %1584 = vmatpush.bf16.msra.mxu0 0
        %1585 = vmatpush.bf16.msra.mxu0 0
        %1586 = vmatpush.bf16.msra.mxu0 %v1062
        %1587 = vmatpush.bf16.msra.mxu0 %v858
        %1588 = vmatmul.bf16.gmra.mxu0 %v947
        %v1589 = vpop.f32.mrf.mxu0
        %v1590 = vadd.f32 %v562, %v1589
        %v1591 = vpop.f32.mrf.mxu0
        %v1592 = vadd.f32 %v567, %v1591
        %1593 = vdwg.mxu0
        %1594 = vmatpush.bf16.msra.mxu0 0
        %1595 = vmatpush.bf16.msra.mxu0 0
        %1596 = vmatpush.bf16.msra.mxu0 0
        %1597 = vmatpush.bf16.msra.mxu0 0
        %1598 = vmatpush.bf16.msra.mxu0 0
        %1599 = vmatpush.bf16.msra.mxu0 0
        %1600 = vmatpush.bf16.msra.mxu0 %v1065
        %1601 = vmatpush.bf16.msra.mxu0 %v859
        %1602 = vmatmul.bf16.gmra.mxu0 %v947
        %v1603 = vpop.f32.mrf.mxu0
        %v1604 = vadd.f32 %v562, %v1603
        %v1605 = vpop.f32.mrf.mxu0
        %v1606 = vadd.f32 %v567, %v1605
        %1607 = vdwg.mxu0
        %1608 = vmatpush.bf16.msra.mxu0 0
        %1609 = vmatpush.bf16.msra.mxu0 0
        %1610 = vmatpush.bf16.msra.mxu0 0
        %1611 = vmatpush.bf16.msra.mxu0 0
        %1612 = vmatpush.bf16.msra.mxu0 0
        %1613 = vmatpush.bf16.msra.mxu0 0
        %1614 = vmatpush.bf16.msra.mxu0 %v1068
        %1615 = vmatpush.bf16.msra.mxu0 %v860
        %1616 = vmatmul.bf16.gmra.mxu0 %v947
        %v1617 = vpop.f32.mrf.mxu0
        %v1618 = vadd.f32 %v562, %v1617
        %v1619 = vpop.f32.mrf.mxu0
        %v1620 = vadd.f32 %v567, %v1619
        %1621 = vdwg.mxu0
        %1622 = vmatpush.bf16.msra.mxu0 0
        %1623 = vmatpush.bf16.msra.mxu0 0
        %1624 = vmatpush.bf16.msra.mxu0 0
        %1625 = vmatpush.bf16.msra.mxu0 0
        %1626 = vmatpush.bf16.msra.mxu0 0
        %1627 = vmatpush.bf16.msra.mxu0 0
        %1628 = vmatpush.bf16.msra.mxu0 %v1071
        %1629 = vmatpush.bf16.msra.mxu0 %v861
        %1630 = vmatmul.bf16.gmra.mxu0 %v947
        %v1631 = vpop.f32.mrf.mxu0
        %v1632 = vadd.f32 %v562, %v1631
        %v1633 = vpop.f32.mrf.mxu0
        %v1634 = vadd.f32 %v567, %v1633
        %1635 = vdwg.mxu0
        %1636 = vmatpush.bf16.msra.mxu0 0
        %1637 = vmatpush.bf16.msra.mxu0 0
        %1638 = vmatpush.bf16.msra.mxu0 0
        %1639 = vmatpush.bf16.msra.mxu0 0
        %1640 = vmatpush.bf16.msra.mxu0 0
        %1641 = vmatpush.bf16.msra.mxu0 0
        %1642 = vmatpush.bf16.msra.mxu0 %v1074
        %1643 = vmatpush.bf16.msra.mxu0 %v862
        %1644 = vmatmul.bf16.gmra.mxu0 %v947
        %v1645 = vpop.f32.mrf.mxu0
        %v1646 = vadd.f32 %v562, %v1645
        %v1647 = vpop.f32.mrf.mxu0
        %v1648 = vadd.f32 %v567, %v1647
        %1649 = vdwg.mxu0
        %v1650 = vmax.f32 %v1086, 0.0
        %v1651 = vmax.f32 %v1100, 0.0
        %v1652 = vmax.f32 %v1114, 0.0
        %v1653 = vmax.f32 %v1128, 0.0
        %v1654 = vmax.f32 %v1142, 0.0
        %v1655 = vmax.f32 %v1156, 0.0
        %v1656 = vmax.f32 %v1170, 0.0
        %v1657 = vmax.f32 %v1184, 0.0
        %v1658 = vmax.f32 %v1198, 0.0
        %v1659 = vmax.f32 %v1212, 0.0
        %v1660 = vmax.f32 %v1226, 0.0
        %v1661 = vmax.f32 %v1240, 0.0
        %v1662 = vmax.f32 %v1254, 0.0
        %v1663 = vmax.f32 %v1268, 0.0
        %v1664 = vmax.f32 %v1282, 0.0
        %v1665 = vmax.f32 %v1296, 0.0
        %v1666 = vmax.f32 %v1310, 0.0
        %v1667 = vmax.f32 %v1324, 0.0
        %v1668 = vmax.f32 %v1338, 0.0
        %v1669 = vmax.f32 %v1352, 0.0
        %v1670 = vmax.f32 %v1366, 0.0
        %v1671 = vmax.f32 %v1380, 0.0
        %v1672 = vmax.f32 %v1394, 0.0
        %v1673 = vmax.f32 %v1408, 0.0
        %v1674 = vmax.f32 %v1422, 0.0
        %v1675 = vmax.f32 %v1436, 0.0
        %v1676 = vmax.f32 %v1450, 0.0
        %v1677 = vmax.f32 %v1464, 0.0
        %v1678 = vmax.f32 %v1478, 0.0
        %v1679 = vmax.f32 %v1492, 0.0
        %v1680 = vmax.f32 %v1506, 0.0
        %v1681 = vmax.f32 %v1520, 0.0
        %v1682 = vmax.f32 %v1534, 0.0
        %v1683 = vmax.f32 %v1548, 0.0
        %v1684 = vmax.f32 %v1562, 0.0
        %v1685 = vmax.f32 %v1576, 0.0
        %v1686 = vmax.f32 %v1590, 0.0
        %v1687 = vmax.f32 %v1604, 0.0
        %v1688 = vmax.f32 %v1618, 0.0
        %v1689 = vmax.f32 %v1632, 0.0
        %v1690 = vmax.f32 %v1646, 0.0
        %v1691 = vmax.f32 %v1088, 0.0
        %v1692 = vmax.f32 %v1102, 0.0
        %v1693 = vmax.f32 %v1116, 0.0
        %v1694 = vmax.f32 %v1130, 0.0
        %v1695 = vmax.f32 %v1144, 0.0
        %v1696 = vmax.f32 %v1158, 0.0
        %v1697 = vmax.f32 %v1172, 0.0
        %v1698 = vmax.f32 %v1186, 0.0
        %v1699 = vmax.f32 %v1200, 0.0
        %v1700 = vmax.f32 %v1214, 0.0
        %v1701 = vmax.f32 %v1228, 0.0
        %v1702 = vmax.f32 %v1242, 0.0
        %v1703 = vmax.f32 %v1256, 0.0
        %v1704 = vmax.f32 %v1270, 0.0
        %v1705 = vmax.f32 %v1284, 0.0
        %v1706 = vmax.f32 %v1298, 0.0
        %v1707 = vmax.f32 %v1312, 0.0
        %v1708 = vmax.f32 %v1326, 0.0
        %v1709 = vmax.f32 %v1340, 0.0
        %v1710 = vmax.f32 %v1354, 0.0
        %v1711 = vmax.f32 %v1368, 0.0
        %v1712 = vmax.f32 %v1382, 0.0
        %v1713 = vmax.f32 %v1396, 0.0
        %v1714 = vmax.f32 %v1410, 0.0
        %v1715 = vmax.f32 %v1424, 0.0
        %v1716 = vmax.f32 %v1438, 0.0
        %v1717 = vmax.f32 %v1452, 0.0
        %v1718 = vmax.f32 %v1466, 0.0
        %v1719 = vmax.f32 %v1480, 0.0
        %v1720 = vmax.f32 %v1494, 0.0
        %v1721 = vmax.f32 %v1508, 0.0
        %v1722 = vmax.f32 %v1522, 0.0
        %v1723 = vmax.f32 %v1536, 0.0
        %v1724 = vmax.f32 %v1550, 0.0
        %v1725 = vmax.f32 %v1564, 0.0
        %v1726 = vmax.f32 %v1578, 0.0
        %v1727 = vmax.f32 %v1592, 0.0
        %v1728 = vmax.f32 %v1606, 0.0
        %v1729 = vmax.f32 %v1620, 0.0
        %v1730 = vmax.f32 %v1634, 0.0
        %v1731 = vmax.f32 %v1648, 0.0
        %v1732 = vmin.f32 %v1650, 6.0
        %v1733 = vmin.f32 %v1651, 6.0
        %v1734 = vmin.f32 %v1652, 6.0
        %v1735 = vmin.f32 %v1653, 6.0
        %v1736 = vmin.f32 %v1654, 6.0
        %v1737 = vmin.f32 %v1655, 6.0
        %v1738 = vmin.f32 %v1656, 6.0
        %v1739 = vmin.f32 %v1657, 6.0
        %v1740 = vmin.f32 %v1658, 6.0
        %v1741 = vmin.f32 %v1659, 6.0
        %v1742 = vmin.f32 %v1660, 6.0
        %v1743 = vmin.f32 %v1661, 6.0
        %v1744 = vmin.f32 %v1662, 6.0
        %v1745 = vmin.f32 %v1663, 6.0
        %v1746 = vmin.f32 %v1664, 6.0
        %v1747 = vmin.f32 %v1665, 6.0
        %v1748 = vmin.f32 %v1666, 6.0
        %v1749 = vmin.f32 %v1667, 6.0
        %v1750 = vmin.f32 %v1668, 6.0
        %v1751 = vmin.f32 %v1669, 6.0
        %v1752 = vmin.f32 %v1670, 6.0
        %v1753 = vmin.f32 %v1671, 6.0
        %v1754 = vmin.f32 %v1672, 6.0
        %v1755 = vmin.f32 %v1673, 6.0
        %v1756 = vmin.f32 %v1674, 6.0
        %v1757 = vmin.f32 %v1675, 6.0
        %v1758 = vmin.f32 %v1676, 6.0
        %v1759 = vmin.f32 %v1677, 6.0
        %v1760 = vmin.f32 %v1678, 6.0
        %v1761 = vmin.f32 %v1679, 6.0
        %v1762 = vmin.f32 %v1680, 6.0
        %v1763 = vmin.f32 %v1681, 6.0
        %v1764 = vmin.f32 %v1682, 6.0
        %v1765 = vmin.f32 %v1683, 6.0
        %v1766 = vmin.f32 %v1684, 6.0
        %v1767 = vmin.f32 %v1685, 6.0
        %v1768 = vmin.f32 %v1686, 6.0
        %v1769 = vmin.f32 %v1687, 6.0
        %v1770 = vmin.f32 %v1688, 6.0
        %v1771 = vmin.f32 %v1689, 6.0
        %v1772 = vmin.f32 %v1690, 6.0
        %v1773 = vmin.f32 %v1691, 6.0
        %v1774 = vmin.f32 %v1692, 6.0
        %v1775 = vmin.f32 %v1693, 6.0
        %v1776 = vmin.f32 %v1694, 6.0
        %v1777 = vmin.f32 %v1695, 6.0
        %v1778 = vmin.f32 %v1696, 6.0
        %v1779 = vmin.f32 %v1697, 6.0
        %v1780 = vmin.f32 %v1698, 6.0
        %v1781 = vmin.f32 %v1699, 6.0
        %v1782 = vmin.f32 %v1700, 6.0
        %v1783 = vmin.f32 %v1701, 6.0
        %v1784 = vmin.f32 %v1702, 6.0
        %v1785 = vmin.f32 %v1703, 6.0
        %v1786 = vmin.f32 %v1704, 6.0
        %v1787 = vmin.f32 %v1705, 6.0
        %v1788 = vmin.f32 %v1706, 6.0
        %v1789 = vmin.f32 %v1707, 6.0
        %v1790 = vmin.f32 %v1708, 6.0
        %v1791 = vmin.f32 %v1709, 6.0
        %v1792 = vmin.f32 %v1710, 6.0
        %v1793 = vmin.f32 %v1711, 6.0
        %v1794 = vmin.f32 %v1712, 6.0
        %v1795 = vmin.f32 %v1713, 6.0
        %v1796 = vmin.f32 %v1714, 6.0
        %v1797 = vmin.f32 %v1715, 6.0
        %v1798 = vmin.f32 %v1716, 6.0
        %v1799 = vmin.f32 %v1717, 6.0
        %v1800 = vmin.f32 %v1718, 6.0
        %v1801 = vmin.f32 %v1719, 6.0
        %v1802 = vmin.f32 %v1720, 6.0
        %v1803 = vmin.f32 %v1721, 6.0
        %v1804 = vmin.f32 %v1722, 6.0
        %v1805 = vmin.f32 %v1723, 6.0
        %v1806 = vmin.f32 %v1724, 6.0
        %v1807 = vmin.f32 %v1725, 6.0
        %v1808 = vmin.f32 %v1726, 6.0
        %v1809 = vmin.f32 %v1727, 6.0
        %v1810 = vmin.f32 %v1728, 6.0
        %v1811 = vmin.f32 %v1729, 6.0
        %v1812 = vmin.f32 %v1730, 6.0
        %v1813 = vmin.f32 %v1731, 6.0
        %1814 = vst [vmem:[%s459] sm:$0xff] %v1732
        %1815 = vst [vmem:[%s459 + $0x8] sm:$0xff] %v1733
        %1816 = vst [vmem:[%s459 + $0x10] sm:$0xff] %v1734
        %1817 = vst [vmem:[%s459 + $0x18] sm:$0xff] %v1735
        %1818 = vst [vmem:[%s459 + $0x20] sm:$0xff] %v1736
        %1819 = vst [vmem:[%s459 + $0x28] sm:$0xff] %v1737
        %1820 = vst [vmem:[%s459 + $0x30] sm:$0xff] %v1738
        %1821 = vst [vmem:[%s459 + $0x38] sm:$0xff] %v1739
        %1822 = vst [vmem:[%s459 + $0x40] sm:$0xff] %v1740
        %1823 = vst [vmem:[%s459 + $0x48] sm:$0xff] %v1741
        %1824 = vst [vmem:[%s459 + $0x50] sm:$0xff] %v1742
        %1825 = vst [vmem:[%s459 + $0x58] sm:$0xff] %v1743
        %1826 = vst [vmem:[%s459 + $0x60] sm:$0xff] %v1744
        %1827 = vst [vmem:[%s459 + $0x68] sm:$0xff] %v1745
        %1828 = vst [vmem:[%s459 + $0x70] sm:$0xff] %v1746
        %1829 = vst [vmem:[%s459 + $0x78] sm:$0xff] %v1747
        %1830 = vst [vmem:[%s459 + $0x80] sm:$0xff] %v1748
        %1831 = vst [vmem:[%s459 + $0x88] sm:$0xff] %v1749
        %1832 = vst [vmem:[%s459 + $0x90] sm:$0xff] %v1750
        %1833 = vst [vmem:[%s459 + $0x98] sm:$0xff] %v1751
        %1834 = vst [vmem:[%s459 + $0xa0] sm:$0xff] %v1752
        %1835 = vst [vmem:[%s459 + $0xa8] sm:$0xff] %v1753
        %1836 = vst [vmem:[%s459 + $0xb0] sm:$0xff] %v1754
        %1837 = vst [vmem:[%s459 + $0xb8] sm:$0xff] %v1755
        %1838 = vst [vmem:[%s459 + $0xc0] sm:$0xff] %v1756
        %1839 = vst [vmem:[%s459 + $0xc8] sm:$0xff] %v1757
        %1840 = vst [vmem:[%s459 + $0xd0] sm:$0xff] %v1758
        %1841 = vst [vmem:[%s459 + $0xd8] sm:$0xff] %v1759
        %1842 = vst [vmem:[%s459 + $0xe0] sm:$0xff] %v1760
        %1843 = vst [vmem:[%s459 + $0xe8] sm:$0xff] %v1761
        %1844 = vst [vmem:[%s459 + $0xf0] sm:$0xff] %v1762
        %1845 = vst [vmem:[%s459 + $0xf8] sm:$0xff] %v1763
        %1846 = vst [vmem:[%s459 + $0x100] sm:$0xff] %v1764
        %1847 = vst [vmem:[%s459 + $0x108] sm:$0xff] %v1765
        %1848 = vst [vmem:[%s459 + $0x110] sm:$0xff] %v1766
        %1849 = vst [vmem:[%s459 + $0x118] sm:$0xff] %v1767
        %1850 = vst [vmem:[%s459 + $0x120] sm:$0xff] %v1768
        %1851 = vst [vmem:[%s459 + $0x128] sm:$0xff] %v1769
        %1852 = vst [vmem:[%s459 + $0x130] sm:$0xff] %v1770
        %1853 = vst [vmem:[%s459 + $0x138] sm:$0xff] %v1771
        %1854 = vst [vmem:[%s459 + $0x140] sm:$0xff] %v1772
        %1855 = vst [vmem:[%s459 + $0x148] sm:$0xff] %v1773
        %1856 = vst [vmem:[%s459 + $0x150] sm:$0xff] %v1774
        %1857 = vst [vmem:[%s459 + $0x158] sm:$0xff] %v1775
        %1858 = vst [vmem:[%s459 + $0x160] sm:$0xff] %v1776
        %1859 = vst [vmem:[%s459 + $0x168] sm:$0xff] %v1777
        %1860 = vst [vmem:[%s459 + $0x170] sm:$0xff] %v1778
        %1861 = vst [vmem:[%s459 + $0x178] sm:$0xff] %v1779
        %1862 = vst [vmem:[%s459 + $0x180] sm:$0xff] %v1780
        %1863 = vst [vmem:[%s459 + $0x188] sm:$0xff] %v1781
        %1864 = vst [vmem:[%s459 + $0x190] sm:$0xff] %v1782
        %1865 = vst [vmem:[%s459 + $0x198] sm:$0xff] %v1783
        %1866 = vst [vmem:[%s459 + $0x1a0] sm:$0xff] %v1784
        %1867 = vst [vmem:[%s459 + $0x1a8] sm:$0xff] %v1785
        %1868 = vst [vmem:[%s459 + $0x1b0] sm:$0xff] %v1786
        %1869 = vst [vmem:[%s459 + $0x1b8] sm:$0xff] %v1787
        %1870 = vst [vmem:[%s459 + $0x1c0] sm:$0xff] %v1788
        %1871 = vst [vmem:[%s459 + $0x1c8] sm:$0xff] %v1789
        %1872 = vst [vmem:[%s459 + $0x1d0] sm:$0xff] %v1790
        %1873 = vst [vmem:[%s459 + $0x1d8] sm:$0xff] %v1791
        %1874 = vst [vmem:[%s459 + $0x1e0] sm:$0xff] %v1792
        %1875 = vst [vmem:[%s459 + $0x1e8] sm:$0xff] %v1793
        %1876 = vst [vmem:[%s459 + $0x1f0] sm:$0xff] %v1794
        %1877 = vst [vmem:[%s459 + $0x1f8] sm:$0xff] %v1795
        %1878 = vst [vmem:[%s459 + $0x200] sm:$0xff] %v1796
        %1879 = vst [vmem:[%s459 + $0x208] sm:$0xff] %v1797
        %1880 = vst [vmem:[%s459 + $0x210] sm:$0xff] %v1798
        %1881 = vst [vmem:[%s459 + $0x218] sm:$0xff] %v1799
        %1882 = vst [vmem:[%s459 + $0x220] sm:$0xff] %v1800
        %1883 = vst [vmem:[%s459 + $0x228] sm:$0xff] %v1801
        %1884 = vst [vmem:[%s459 + $0x230] sm:$0xff] %v1802
        %1885 = vst [vmem:[%s459 + $0x238] sm:$0xff] %v1803
        %1886 = vst [vmem:[%s459 + $0x240] sm:$0xff] %v1804
        %1887 = vst [vmem:[%s459 + $0x248] sm:$0xff] %v1805
        %1888 = vst [vmem:[%s459 + $0x250] sm:$0xff] %v1806
        %1889 = vst [vmem:[%s459 + $0x258] sm:$0xff] %v1807
        %1890 = vst [vmem:[%s459 + $0x260] sm:$0xff] %v1808
        %1891 = vst [vmem:[%s459 + $0x268] sm:$0xff] %v1809
        %1892 = vst [vmem:[%s459 + $0x270] sm:$0xff] %v1810
        %1893 = vst [vmem:[%s459 + $0x278] sm:$0xff] %v1811
        %1894 = vst [vmem:[%s459 + $0x280] sm:$0xff] %v1812
        %1895 = vst [vmem:[%s459 + $0x288] sm:$0xff] %v1813
        %s1896 = sand.u32 %s90, 1
        %s1897 = sand.u32 %s90, 1
        %s1898 = smul.addr %s1897, 656
        %s1899 = scalar_lea.vmem [#allocation3], %s1898
        // Predicated region
        $region99: #{conv2d_relu6.1} parent=93 // pred_check
          %p1900 = pneg %p100
        $region100: #{conv2d_relu6.1} parent=93 // pred_check_branch
          %1902 = sbr.rel (%p1900) target = $region102
        $region101: #{conv2d_relu6.1} parent=93 // pred_region
          %s1903 = smul.u32 41, %s14
          %s1904 = ssub.s32 81, %s1903
          %p1905 = scmp.lt.s32.totalorder %s1904, 41
          %s1906 = scalar_select %p1905, %s1904, 41
          %s1907 = smul.u32 16, %s1906
          %p1908 = scmp.ne.s32.totalorder 0, %s1907
          %s1909 = smul.addr %s1903, 8
          %s1910 = scalar_lea.vmem %s3, %s1909
          %s1911 = smul.u32 %s1906, 8
          // Predicated region
          $region103: #{conv2d_relu6.1} parent=101 // pred_check
            %p1912 = pneg %p1908
          $region104: #{conv2d_relu6.1} parent=101 // pred_check_branch
            %1914 = sbr.rel (%p1912) target = $region106
          $region105: #{conv2d_relu6.1} parent=101 // pred_region
            %p1915 = scmp.lt.u32.totalorder %s1911, 8
            %p1916 = pneg %p1915
            // Predicated region
            $region107: #{conv2d_relu6.1} parent=105 // pred_check
              _
            $region108: #{conv2d_relu6.1} parent=105 // pred_check_branch
              %1918 = sbr.rel (%p1915) target = $region110
            $region109: #{conv2d_relu6.1} parent=105 // pred_region
              %s1936 = sand.u32 %s1911, 7
              %p1937 = scmp.eq.s32.totalorder %s1936, 0
              // Predicated region
              $region122: #{conv2d_relu6.1} parent=109 // pred_check
                %p1938 = pneg %p1937
              $region123: #{conv2d_relu6.1} parent=109 // pred_check_branch
                %1940 = sbr.rel (%p1938) target = $region125
              $region124: #{conv2d_relu6.1} parent=109 // pred_region
                %s1941 = sshrl.u32 %s1911, 3
                %s1942 = sshrl.u32 %s1941, 4
                // While loop
                $region126: #{conv2d_relu6.1} parent=124 // loop_pre_header
                  _
                $region127: #{conv2d_relu6.1} parent=124 // loop_header
                  %s1944 = sphi 0, %s1946
                  %p1945 = scmp.ge.s32.totalorder %s1944, %s1942
                  %s1949 = sphi 0, %s2018
                  %s1950 = sphi %s1899, %s2021
                  %s1951 = sphi %s1910, %s2022
                $region128: #{conv2d_relu6.1} parent=124 // loop_header_branch
                  %1948 = sbr.rel (%p1945) target = $region132
                $region129: #{conv2d_relu6.1} parent=124 // loop_body
                  %v1952 = vld [vmem:[%s1950] sm:$0xff]
                  %1953 = vst [vmem:[%s1951] sm:$0xff] %v1952
                  %v1954 = vld [vmem:[%s1950 + $0x8] sm:$0xff]
                  %1955 = vst [vmem:[%s1951 + $0x8] sm:$0xff] %v1954
                  %v1956 = vld [vmem:[%s1950 + $0x10] sm:$0xff]
                  %1957 = vst [vmem:[%s1951 + $0x10] sm:$0xff] %v1956
                  %v1958 = vld [vmem:[%s1950 + $0x18] sm:$0xff]
                  %1959 = vst [vmem:[%s1951 + $0x18] sm:$0xff] %v1958
                  %v1960 = vld [vmem:[%s1950 + $0x20] sm:$0xff]
                  %1961 = vst [vmem:[%s1951 + $0x20] sm:$0xff] %v1960
                  %v1962 = vld [vmem:[%s1950 + $0x28] sm:$0xff]
                  %1963 = vst [vmem:[%s1951 + $0x28] sm:$0xff] %v1962
                  %v1964 = vld [vmem:[%s1950 + $0x30] sm:$0xff]
                  %1965 = vst [vmem:[%s1951 + $0x30] sm:$0xff] %v1964
                  %v1966 = vld [vmem:[%s1950 + $0x38] sm:$0xff]
                  %1967 = vst [vmem:[%s1951 + $0x38] sm:$0xff] %v1966
                  %v1968 = vld [vmem:[%s1950 + $0x40] sm:$0xff]
                  %1969 = vst [vmem:[%s1951 + $0x40] sm:$0xff] %v1968
                  %v1970 = vld [vmem:[%s1950 + $0x48] sm:$0xff]
                  %1971 = vst [vmem:[%s1951 + $0x48] sm:$0xff] %v1970
                  %v1972 = vld [vmem:[%s1950 + $0x50] sm:$0xff]
                  %1973 = vst [vmem:[%s1951 + $0x50] sm:$0xff] %v1972
                  %v1974 = vld [vmem:[%s1950 + $0x58] sm:$0xff]
                  %1975 = vst [vmem:[%s1951 + $0x58] sm:$0xff] %v1974
                  %v1976 = vld [vmem:[%s1950 + $0x60] sm:$0xff]
                  %1977 = vst [vmem:[%s1951 + $0x60] sm:$0xff] %v1976
                  %v1978 = vld [vmem:[%s1950 + $0x68] sm:$0xff]
                  %1979 = vst [vmem:[%s1951 + $0x68] sm:$0xff] %v1978
                  %v1980 = vld [vmem:[%s1950 + $0x70] sm:$0xff]
                  %1981 = vst [vmem:[%s1951 + $0x70] sm:$0xff] %v1980
                  %v1982 = vld [vmem:[%s1950 + $0x78] sm:$0xff]
                  %1983 = vst [vmem:[%s1951 + $0x78] sm:$0xff] %v1982
                  %v1984 = vld [vmem:[%s1950 + $0x148] sm:$0xff]
                  %1985 = vst [vmem:[%s1951 + $0x288] sm:$0xff] %v1984
                  %v1986 = vld [vmem:[%s1950 + $0x150] sm:$0xff]
                  %1987 = vst [vmem:[%s1951 + $0x290] sm:$0xff] %v1986
                  %v1988 = vld [vmem:[%s1950 + $0x158] sm:$0xff]
                  %1989 = vst [vmem:[%s1951 + $0x298] sm:$0xff] %v1988
                  %v1990 = vld [vmem:[%s1950 + $0x160] sm:$0xff]
                  %1991 = vst [vmem:[%s1951 + $0x2a0] sm:$0xff] %v1990
                  %v1992 = vld [vmem:[%s1950 + $0x168] sm:$0xff]
                  %1993 = vst [vmem:[%s1951 + $0x2a8] sm:$0xff] %v1992
                  %v1994 = vld [vmem:[%s1950 + $0x170] sm:$0xff]
                  %1995 = vst [vmem:[%s1951 + $0x2b0] sm:$0xff] %v1994
                  %v1996 = vld [vmem:[%s1950 + $0x178] sm:$0xff]
                  %1997 = vst [vmem:[%s1951 + $0x2b8] sm:$0xff] %v1996
                  %v1998 = vld [vmem:[%s1950 + $0x180] sm:$0xff]
                  %1999 = vst [vmem:[%s1951 + $0x2c0] sm:$0xff] %v1998
                  %v2000 = vld [vmem:[%s1950 + $0x188] sm:$0xff]
                  %2001 = vst [vmem:[%s1951 + $0x2c8] sm:$0xff] %v2000
                  %v2002 = vld [vmem:[%s1950 + $0x190] sm:$0xff]
                  %2003 = vst [vmem:[%s1951 + $0x2d0] sm:$0xff] %v2002
                  %v2004 = vld [vmem:[%s1950 + $0x198] sm:$0xff]
                  %2005 = vst [vmem:[%s1951 + $0x2d8] sm:$0xff] %v2004
                  %v2006 = vld [vmem:[%s1950 + $0x1a0] sm:$0xff]
                  %2007 = vst [vmem:[%s1951 + $0x2e0] sm:$0xff] %v2006
                  %v2008 = vld [vmem:[%s1950 + $0x1a8] sm:$0xff]
                  %2009 = vst [vmem:[%s1951 + $0x2e8] sm:$0xff] %v2008
                  %v2010 = vld [vmem:[%s1950 + $0x1b0] sm:$0xff]
                  %2011 = vst [vmem:[%s1951 + $0x2f0] sm:$0xff] %v2010
                  %v2012 = vld [vmem:[%s1950 + $0x1b8] sm:$0xff]
                  %2013 = vst [vmem:[%s1951 + $0x2f8] sm:$0xff] %v2012
                  %v2014 = vld [vmem:[%s1950 + $0x1c0] sm:$0xff]
                  %2015 = vst [vmem:[%s1951 + $0x300] sm:$0xff] %v2014
                  %s2016 = sadd.s32 1, %s1949
                  %p2017 = scmp.ge.s32.totalorder %s2016, %s1942
                  %s2018 = scalar_select %p2017, 0, %s2016
                  %s2019 = smul.u32 %s2018, 128
                  %s2020 = smul.u32 %s2018, 128
                  %s2021 = scalar_lea.vmem %s1899, %s2019 [#allocation3]
                  %s2022 = scalar_lea.vmem %s1910, %s2020
                $region130: #{conv2d_relu6.1} parent=124 // loop_footer
                  %s1946 = sadd.s32 %s1944, 1
                $region131: #{conv2d_relu6.1} parent=124 // loop_footer_branch
                  %1943 = sbr.rel target = $region127
                $region132: #{conv2d_relu6.1} parent=124 // loop_exit
                  _
                %s2023 = sshrl.u32 %s1941, 4
                %s2024 = sand.u32 %s1941, 15
                %s2025 = smul.u32 %s2023, 16
                %s2026 = smul.u32 8, %s2025
                %s2027 = scalar_lea.vmem %s1899, %s2026 [#allocation3]
                %s2028 = smul.u32 8, %s2025
                %s2029 = scalar_lea.vmem %s1910, %s2028
                // While loop
                $region133: #{conv2d_relu6.1} parent=124 // loop_pre_header
                  _
                $region134: #{conv2d_relu6.1} parent=124 // loop_header
                  %s2031 = sphi 0, %s2033
                  %p2032 = scmp.ge.s32.totalorder %s2031, %s2024
                  %s2036 = sphi 0, %s2045
                  %s2037 = sphi %s2027, %s2048
                  %s2038 = sphi %s2029, %s2049
                $region135: #{conv2d_relu6.1} parent=124 // loop_header_branch
                  %2035 = sbr.rel (%p2032) target = $region139
                $region136: #{conv2d_relu6.1} parent=124 // loop_body
                  %v2039 = vld [vmem:[%s2037] sm:$0xff]
                  %2040 = vst [vmem:[%s2038] sm:$0xff] %v2039
                  %v2041 = vld [vmem:[%s2037 + $0x148] sm:$0xff]
                  %2042 = vst [vmem:[%s2038 + $0x288] sm:$0xff] %v2041
                  %s2043 = sadd.s32 1, %s2036
                  %p2044 = scmp.ge.s32.totalorder %s2043, %s2024
                  %s2045 = scalar_select %p2044, 0, %s2043
                  %s2046 = smul.u32 %s2045, 8
                  %s2047 = smul.u32 %s2045, 8
                  %s2048 = scalar_lea.vmem %s2027, %s2046 [#allocation3]
                  %s2049 = scalar_lea.vmem %s2029, %s2047
                $region137: #{conv2d_relu6.1} parent=124 // loop_footer
                  %s2033 = sadd.s32 %s2031, 1
                $region138: #{conv2d_relu6.1} parent=124 // loop_footer_branch
                  %2030 = sbr.rel target = $region134
                $region139: #{conv2d_relu6.1} parent=124 // loop_exit
                  _
              $region125: #{conv2d_relu6.1} parent=109 // pred_fallthru
                _
              %p2050 = pneg %p1937
              // Predicated region
              $region140: #{conv2d_relu6.1} parent=109 // pred_check
                _
              $region141: #{conv2d_relu6.1} parent=109 // pred_check_branch
                %2052 = sbr.rel (%p1937) target = $region143
              $region142: #{conv2d_relu6.1} parent=109 // pred_region
                %s2053 = sand.u32 %s1911, 7
                %s2054 = ssub.s32 %s1911, %s2053
                %s2055 = scalar_lea.vmem %s1899, %s2054 [#allocation3]
                %s2056 = ssub.s32 %s1911, %s2053
                %s2057 = scalar_lea.vmem %s1910, %s2056
                %s2058 = sshrl.u32 %s1911, 3
                %s2059 = sshrl.u32 %s2058, 4
                // While loop
                $region144: #{conv2d_relu6.1} parent=142 // loop_pre_header
                  _
                $region145: #{conv2d_relu6.1} parent=142 // loop_header
                  %s2061 = sphi 0, %s2063
                  %p2062 = scmp.ge.s32.totalorder %s2061, %s2059
                  %s2066 = sphi 0, %s2135
                  %s2067 = sphi %s1899, %s2138
                  %s2068 = sphi %s1910, %s2139
                $region146: #{conv2d_relu6.1} parent=142 // loop_header_branch
                  %2065 = sbr.rel (%p2062) target = $region150
                $region147: #{conv2d_relu6.1} parent=142 // loop_body
                  %v2069 = vld [vmem:[%s2067] sm:$0xff]
                  %2070 = vst [vmem:[%s2068] sm:$0xff] %v2069
                  %v2071 = vld [vmem:[%s2067 + $0x8] sm:$0xff]
                  %2072 = vst [vmem:[%s2068 + $0x8] sm:$0xff] %v2071
                  %v2073 = vld [vmem:[%s2067 + $0x10] sm:$0xff]
                  %2074 = vst [vmem:[%s2068 + $0x10] sm:$0xff] %v2073
                  %v2075 = vld [vmem:[%s2067 + $0x18] sm:$0xff]
                  %2076 = vst [vmem:[%s2068 + $0x18] sm:$0xff] %v2075
                  %v2077 = vld [vmem:[%s2067 + $0x20] sm:$0xff]
                  %2078 = vst [vmem:[%s2068 + $0x20] sm:$0xff] %v2077
                  %v2079 = vld [vmem:[%s2067 + $0x28] sm:$0xff]
                  %2080 = vst [vmem:[%s2068 + $0x28] sm:$0xff] %v2079
                  %v2081 = vld [vmem:[%s2067 + $0x30] sm:$0xff]
                  %2082 = vst [vmem:[%s2068 + $0x30] sm:$0xff] %v2081
                  %v2083 = vld [vmem:[%s2067 + $0x38] sm:$0xff]
                  %2084 = vst [vmem:[%s2068 + $0x38] sm:$0xff] %v2083
                  %v2085 = vld [vmem:[%s2067 + $0x40] sm:$0xff]
                  %2086 = vst [vmem:[%s2068 + $0x40] sm:$0xff] %v2085
                  %v2087 = vld [vmem:[%s2067 + $0x48] sm:$0xff]
                  %2088 = vst [vmem:[%s2068 + $0x48] sm:$0xff] %v2087
                  %v2089 = vld [vmem:[%s2067 + $0x50] sm:$0xff]
                  %2090 = vst [vmem:[%s2068 + $0x50] sm:$0xff] %v2089
                  %v2091 = vld [vmem:[%s2067 + $0x58] sm:$0xff]
                  %2092 = vst [vmem:[%s2068 + $0x58] sm:$0xff] %v2091
                  %v2093 = vld [vmem:[%s2067 + $0x60] sm:$0xff]
                  %2094 = vst [vmem:[%s2068 + $0x60] sm:$0xff] %v2093
                  %v2095 = vld [vmem:[%s2067 + $0x68] sm:$0xff]
                  %2096 = vst [vmem:[%s2068 + $0x68] sm:$0xff] %v2095
                  %v2097 = vld [vmem:[%s2067 + $0x70] sm:$0xff]
                  %2098 = vst [vmem:[%s2068 + $0x70] sm:$0xff] %v2097
                  %v2099 = vld [vmem:[%s2067 + $0x78] sm:$0xff]
                  %2100 = vst [vmem:[%s2068 + $0x78] sm:$0xff] %v2099
                  %v2101 = vld [vmem:[%s2067 + $0x148] sm:$0xff]
                  %2102 = vst [vmem:[%s2068 + $0x288] sm:$0xff] %v2101
                  %v2103 = vld [vmem:[%s2067 + $0x150] sm:$0xff]
                  %2104 = vst [vmem:[%s2068 + $0x290] sm:$0xff] %v2103
                  %v2105 = vld [vmem:[%s2067 + $0x158] sm:$0xff]
                  %2106 = vst [vmem:[%s2068 + $0x298] sm:$0xff] %v2105
                  %v2107 = vld [vmem:[%s2067 + $0x160] sm:$0xff]
                  %2108 = vst [vmem:[%s2068 + $0x2a0] sm:$0xff] %v2107
                  %v2109 = vld [vmem:[%s2067 + $0x168] sm:$0xff]
                  %2110 = vst [vmem:[%s2068 + $0x2a8] sm:$0xff] %v2109
                  %v2111 = vld [vmem:[%s2067 + $0x170] sm:$0xff]
                  %2112 = vst [vmem:[%s2068 + $0x2b0] sm:$0xff] %v2111
                  %v2113 = vld [vmem:[%s2067 + $0x178] sm:$0xff]
                  %2114 = vst [vmem:[%s2068 + $0x2b8] sm:$0xff] %v2113
                  %v2115 = vld [vmem:[%s2067 + $0x180] sm:$0xff]
                  %2116 = vst [vmem:[%s2068 + $0x2c0] sm:$0xff] %v2115
                  %v2117 = vld [vmem:[%s2067 + $0x188] sm:$0xff]
                  %2118 = vst [vmem:[%s2068 + $0x2c8] sm:$0xff] %v2117
                  %v2119 = vld [vmem:[%s2067 + $0x190] sm:$0xff]
                  %2120 = vst [vmem:[%s2068 + $0x2d0] sm:$0xff] %v2119
                  %v2121 = vld [vmem:[%s2067 + $0x198] sm:$0xff]
                  %2122 = vst [vmem:[%s2068 + $0x2d8] sm:$0xff] %v2121
                  %v2123 = vld [vmem:[%s2067 + $0x1a0] sm:$0xff]
                  %2124 = vst [vmem:[%s2068 + $0x2e0] sm:$0xff] %v2123
                  %v2125 = vld [vmem:[%s2067 + $0x1a8] sm:$0xff]
                  %2126 = vst [vmem:[%s2068 + $0x2e8] sm:$0xff] %v2125
                  %v2127 = vld [vmem:[%s2067 + $0x1b0] sm:$0xff]
                  %2128 = vst [vmem:[%s2068 + $0x2f0] sm:$0xff] %v2127
                  %v2129 = vld [vmem:[%s2067 + $0x1b8] sm:$0xff]
                  %2130 = vst [vmem:[%s2068 + $0x2f8] sm:$0xff] %v2129
                  %v2131 = vld [vmem:[%s2067 + $0x1c0] sm:$0xff]
                  %2132 = vst [vmem:[%s2068 + $0x300] sm:$0xff] %v2131
                  %s2133 = sadd.s32 1, %s2066
                  %p2134 = scmp.ge.s32.totalorder %s2133, %s2059
                  %s2135 = scalar_select %p2134, 0, %s2133
                  %s2136 = smul.u32 %s2135, 128
                  %s2137 = smul.u32 %s2135, 128
                  %s2138 = scalar_lea.vmem %s1899, %s2136 [#allocation3]
                  %s2139 = scalar_lea.vmem %s1910, %s2137
                $region148: #{conv2d_relu6.1} parent=142 // loop_footer
                  %s2063 = sadd.s32 %s2061, 1
                $region149: #{conv2d_relu6.1} parent=142 // loop_footer_branch
                  %2060 = sbr.rel target = $region145
                $region150: #{conv2d_relu6.1} parent=142 // loop_exit
                  _
                %s2140 = sshrl.u32 %s2058, 4
                %s2141 = sand.u32 %s2058, 15
                %s2142 = smul.u32 %s2140, 16
                %s2143 = smul.u32 8, %s2142
                %s2144 = scalar_lea.vmem %s1899, %s2143 [#allocation3]
                %s2145 = smul.u32 8, %s2142
                %s2146 = scalar_lea.vmem %s1910, %s2145
                // While loop
                $region151: #{conv2d_relu6.1} parent=142 // loop_pre_header
                  _
                $region152: #{conv2d_relu6.1} parent=142 // loop_header
                  %s2148 = sphi 0, %s2150
                  %p2149 = scmp.ge.s32.totalorder %s2148, %s2141
                  %s2153 = sphi 0, %s2162
                  %s2154 = sphi %s2144, %s2165
                  %s2155 = sphi %s2146, %s2166
                $region153: #{conv2d_relu6.1} parent=142 // loop_header_branch
                  %2152 = sbr.rel (%p2149) target = $region157
                $region154: #{conv2d_relu6.1} parent=142 // loop_body
                  %v2156 = vld [vmem:[%s2154] sm:$0xff]
                  %2157 = vst [vmem:[%s2155] sm:$0xff] %v2156
                  %v2158 = vld [vmem:[%s2154 + $0x148] sm:$0xff]
                  %2159 = vst [vmem:[%s2155 + $0x288] sm:$0xff] %v2158
                  %s2160 = sadd.s32 1, %s2153
                  %p2161 = scmp.ge.s32.totalorder %s2160, %s2141
                  %s2162 = scalar_select %p2161, 0, %s2160
                  %s2163 = smul.u32 %s2162, 8
                  %s2164 = smul.u32 %s2162, 8
                  %s2165 = scalar_lea.vmem %s2144, %s2163 [#allocation3]
                  %s2166 = scalar_lea.vmem %s2146, %s2164
                $region155: #{conv2d_relu6.1} parent=142 // loop_footer
                  %s2150 = sadd.s32 %s2148, 1
                $region156: #{conv2d_relu6.1} parent=142 // loop_footer_branch
                  %2147 = sbr.rel target = $region152
                $region157: #{conv2d_relu6.1} parent=142 // loop_exit
                  _
                %s2167 = sshll.u32 1, %s2053
                %s2168 = ssub.s32 %s2167, 1
                loop: start=0, step=1, limit=1
                $region158: #{conv2d_relu6.1} parent=142 // loop_pre_header
                  _
                $region159: #{conv2d_relu6.1} parent=142 // loop_header
                  %s2170 = sphi 0, %s2174
                  %p2171 = scmp.ge.s32.totalorder %s2170, 1
                  %s2175 = sphi %s2055, %s2055
                  %s2176 = sphi %s2057, %s2057
                $region160: #{conv2d_relu6.1} parent=142 // loop_header_branch
                  %2173 = sbr.rel (%p2171) target = $region164
                $region161: #{conv2d_relu6.1} parent=142 // loop_body
                  %v2177 = vld [vmem:[%s2175] sm:%s2168]
                  %2178 = vst [vmem:[%s2176] sm:%s2168] %v2177
                  %v2179 = vld [vmem:[%s2175 + $0x148] sm:%s2168]
                  %2180 = vst [vmem:[%s2176 + $0x288] sm:%s2168] %v2179
                $region162: #{conv2d_relu6.1} parent=142 // loop_footer
                  %s2174 = sadd.s32 1, %s2170
                $region163: #{conv2d_relu6.1} parent=142 // loop_footer_branch
                  %2169 = sbr.rel target = $region159
                $region164: #{conv2d_relu6.1} parent=142 // loop_exit
                  _
              $region143: #{conv2d_relu6.1} parent=109 // pred_fallthru
                _
            $region110: #{conv2d_relu6.1} parent=105 // pred_fallthru
              _
            // Predicated region
            $region111: #{conv2d_relu6.1} parent=105 // pred_check
              %p1919 = pneg %p1915
            $region112: #{conv2d_relu6.1} parent=105 // pred_check_branch
              %1921 = sbr.rel (%p1919) target = $region114
            $region113: #{conv2d_relu6.1} parent=105 // pred_region
              %s1922 = sshll.u32 1, %s1911
              %s1923 = ssub.s32 %s1922, 1
              loop: start=0, step=1, limit=1
              $region115: #{conv2d_relu6.1} parent=113 // loop_pre_header
                _
              $region116: #{conv2d_relu6.1} parent=113 // loop_header
                %s1925 = sphi 0, %s1929
                %p1926 = scmp.ge.s32.totalorder %s1925, 1
                %s1930 = sphi %s1899, %s1899
                %s1931 = sphi %s1910, %s1910
              $region117: #{conv2d_relu6.1} parent=113 // loop_header_branch
                %1928 = sbr.rel (%p1926) target = $region121
              $region118: #{conv2d_relu6.1} parent=113 // loop_body
                %v1932 = vld [vmem:[%s1930] sm:%s1923]
                %1933 = vst [vmem:[%s1931] sm:%s1923] %v1932
                %v1934 = vld [vmem:[%s1930 + $0x148] sm:%s1923]
                %1935 = vst [vmem:[%s1931 + $0x288] sm:%s1923] %v1934
              $region119: #{conv2d_relu6.1} parent=113 // loop_footer
                %s1929 = sadd.s32 1, %s1925
              $region120: #{conv2d_relu6.1} parent=113 // loop_footer_branch
                %1924 = sbr.rel target = $region116
              $region121: #{conv2d_relu6.1} parent=113 // loop_exit
                _
            $region114: #{conv2d_relu6.1} parent=105 // pred_fallthru
              _
          $region106: #{conv2d_relu6.1} parent=101 // pred_fallthru
            _
          %2181 = vnop
        $region102: #{conv2d_relu6.1} parent=93 // pred_fallthru
          _
      $region94: #{conv2d_relu6.1} parent=5 // pred_fallthru
        _
      %p2182 = scmp.le.s32.totalorder 2, %s9
      // Predicated region
      $region165: #{conv2d_relu6.1} parent=5 // pred_check
        %p2183 = pneg %p2182
      $region166: #{conv2d_relu6.1} parent=5 // pred_check_branch
        %2185 = sbr.rel (%p2183) target = $region168
      $region167: #{conv2d_relu6.1} parent=5 // pred_region
        %s2186 = ssub.s32 %s9, 2
        // Predicated region
        $region169: #{conv2d_relu6.1} parent=167 // pred_check
          %p2187 = pneg %p106
        $region170: #{conv2d_relu6.1} parent=167 // pred_check_branch
          %2189 = sbr.rel (%p2187) target = $region172
        $region171: #{conv2d_relu6.1} parent=167 // pred_region
          %s2190 = sand.u32 %s91, 1
          %s2191 = sand.u32 %s91, 1
          %s2192 = smul.addr %s2191, 656
          %s2193 = scalar_lea.vmem [#allocation3], %s2192
        $region172: #{conv2d_relu6.1} parent=167 // pred_fallthru
          _
      $region168: #{conv2d_relu6.1} parent=5 // pred_fallthru
        _
    $region6: #{conv2d_relu6.1} parent=1 // loop_footer
      %s13 = sadd.s32 1, %s9
    $region7: #{conv2d_relu6.1} parent=1 // loop_footer_branch
      %8 = sbr.rel target = $region3
    $region8: #{conv2d_relu6.1} parent=1 // loop_exit
      _

</llo_original>
